<compile_context>
chip_gen: v7x
topology: tpu7x:2x2x1
jax: 0.10.0
libtpu: 0.0.40
codegen_flags: <defaults>
</compile_context>

<pallas_src>
import math
import functools

import jax
import jax.numpy as jnp
from jax.experimental import pallas as pl
from jax.experimental.pallas import tpu as pltpu


# ----------------------------------------------------------------------------
# Kernel: one (batch element, encoder layer) grid step.
#   Grid = (B, NL); batch axis "parallel", layer axis "arbitrary".
#   Activations for the current batch element stay resident in y_scr (VMEM scratch)
#   across the layer axis; per-layer weights are streamed by BlockSpec index_maps.
# ----------------------------------------------------------------------------
def encoder_layer_kernel(x_ref, win_ref, peb_ref,
                         wq_ref, bq_ref, wk_ref, bk_ref, wv_ref, bv_ref,
                         wo_ref, bo_ref, ln1w_ref, ln1b_ref,
                         w1_ref, b1_ref, w2_ref, b2_ref,
                         ln2w_ref, ln2b_ref,
                         o_ref, y_scr, *, n_head, compute_dtype):
    eps = 1e-5
    layer = pl.program_id(1)
    L, D = y_scr.shape
    H = n_head
    cdt = compute_dtype

    def layernorm(t, w, b):
        # one-pass stats: var = E[x^2] - E[x]^2  (single lane-reduction pass each)
        mu = jnp.mean(t, axis=-1, keepdims=True)
        var = jnp.mean(t * t, axis=-1, keepdims=True) - mu * mu
        return (t - mu) * jax.lax.rsqrt(var + eps) * w + b

    # ---- layer 0: input projection + positional encoding (in_proj bias pre-folded into PE)
    @pl.when(layer == 0)
    def _():
        x = x_ref[0].astype(cdt)                                        # (L, F)
        y_scr[...] = (jnp.dot(x, win_ref[...],
                              preferred_element_type=jnp.float32)
                      + peb_ref[...])                                   # (L, D) f32

    y = y_scr[...]                                                      # (L, D) f32, resident
    yc = y.astype(cdt)

    # ---- multi-head self-attention (1/sqrt(hd) pre-folded into Q weights/bias).
    # Per-head weight slices prepared wrapper-side -> no activation transposes in-kernel;
    # heads are recombined by accumulating ctx_h @ Wo_h (no concat / relayout).
    attn = jnp.zeros((L, D), jnp.float32)
    for h in range(H):
        q = jnp.dot(yc, wq_ref[0, h], preferred_element_type=jnp.float32) + bq_ref[0, h]
        k = jnp.dot(yc, wk_ref[0, h], preferred_element_type=jnp.float32) + bk_ref[0, h]
        v = jnp.dot(yc, wv_ref[0, h], preferred_element_type=jnp.float32) + bv_ref[0, h]
        s = jnp.einsum('qd,kd->qk', q.astype(cdt), k.astype(cdt),
                       preferred_element_type=jnp.float32)              # (L, L) f32
        s = s - jnp.max(s, axis=-1, keepdims=True)
        p = jnp.exp(s)
        # EUP approximate reciprocal (frees VALU); deviation << bf16 matmul error.
        p = p * pl.reciprocal(jnp.sum(p, axis=-1, keepdims=True), approx=True)
        ctx = jnp.dot(p.astype(cdt), v.astype(cdt),
                      preferred_element_type=jnp.float32)               # (L, hd)
        attn = attn + jnp.dot(ctx.astype(cdt), wo_ref[0, h],
                              preferred_element_type=jnp.float32)       # accumulate head h
    attn = attn + bo_ref[0]

    # ---- residual + LayerNorm 1 (post-norm, PyTorch default), all f32
    y1 = layernorm(y + attn, ln1w_ref[0], ln1b_ref[0])

    # ---- feed-forward (ReLU)
    h1 = jnp.dot(y1.astype(cdt), w1_ref[0], preferred_element_type=jnp.float32) + b1_ref[0]
    h1 = jnp.maximum(h1, 0.0)
    h2 = jnp.dot(h1.astype(cdt), w2_ref[0], preferred_element_type=jnp.float32) + b2_ref[0]

    # ---- residual + LayerNorm 2; keep activation resident, write output on last layer only
    y_new = layernorm(y1 + h2, ln2w_ref[0], ln2b_ref[0])
    y_scr[...] = y_new

    @pl.when(layer == pl.num_programs(1) - 1)
    def _():
        o_ref[0] = y_new


# ----------------------------------------------------------------------------
# Wrapper: layout plumbing (transpose, per-head slicing, scale/bias folding, layer
# stacking, bf16 cast) then a single (B, NL)-grid pallas_call.
# ----------------------------------------------------------------------------
def trajectory_encoder_forward(x, params, *, n_head, compute_dtype=jnp.bfloat16):
    B, L, F = x.shape
    D = params["in_proj_w"].shape[0]
    FF = params["layers"][0]["w1"].shape[0]
    NL = len(params["layers"])
    assert D % n_head == 0
    H, hd = n_head, D // n_head
    max_len = params["pe"].shape[0]
    assert L <= max_len, f"sequence length {L} exceeds positional-encoding max_len {max_len}"
    scale = jnp.float32(1.0 / math.sqrt(hd))
    wdt = compute_dtype

    # input projection: torch W is (out, in) -> (F, D); bias folded into the PE table.
    win = params["in_proj_w"].T.astype(wdt)                                      # (F, D)
    peb = (params["pe"][:L] + params["in_proj_b"].reshape(1, D)).astype(jnp.float32)  # (L, D)

    def stack(fn, dtype):
        return jnp.stack([fn(lp) for lp in params["layers"]]).astype(dtype)

    def head_split_w(w2d):                      # (D_in, D_out) -> (H, D_in, hd)
        return w2d.reshape(D, H, hd).transpose(1, 0, 2)

    wq = stack(lambda lp: head_split_w((lp["wqkv"][:D] * scale).T), wdt)         # (NL,H,D,hd)
    wk = stack(lambda lp: head_split_w(lp["wqkv"][D:2 * D].T), wdt)
    wv = stack(lambda lp: head_split_w(lp["wqkv"][2 * D:].T), wdt)
    bq = stack(lambda lp: (lp["bqkv"].reshape(3 * D)[:D] * scale).reshape(H, 1, hd),
               jnp.float32)                                                      # (NL,H,1,hd)
    bk = stack(lambda lp: lp["bqkv"].reshape(3 * D)[D:2 * D].reshape(H, 1, hd), jnp.float32)
    bv = stack(lambda lp: lp["bqkv"].reshape(3 * D)[2 * D:].reshape(H, 1, hd), jnp.float32)
    wo = stack(lambda lp: lp["wo"].T.reshape(H, hd, D), wdt)                     # (NL,H,hd,D)
    bo = stack(lambda lp: lp["bo"].reshape(1, D), jnp.float32)                   # (NL,1,D)
    ln1w = stack(lambda lp: lp["ln1w"].reshape(1, D), jnp.float32)
    ln1b = stack(lambda lp: lp["ln1b"].reshape(1, D), jnp.float32)
    w1 = stack(lambda lp: lp["w1"].T, wdt)                                       # (NL,D,FF)
    b1 = stack(lambda lp: lp["b1"].reshape(1, FF), jnp.float32)
    w2 = stack(lambda lp: lp["w2"].T, wdt)                                       # (NL,FF,D)
    b2 = stack(lambda lp: lp["b2"].reshape(1, D), jnp.float32)
    ln2w = stack(lambda lp: lp["ln2w"].reshape(1, D), jnp.float32)
    ln2b = stack(lambda lp: lp["ln2b"].reshape(1, D), jnp.float32)

    # Per-layer weight specs: block index follows the layer grid axis -> double-buffered
    # prefetch of layer l+1 weights behind layer l compute.
    def lspec(shape):
        n = len(shape)
        return pl.BlockSpec((1,) + tuple(shape), lambda b, l: (l,) + (0,) * n)

    def bspec(shape):                            # layer/batch-invariant operands
        n = len(shape)
        return pl.BlockSpec(tuple(shape), lambda b, l: (0,) * n)

    in_specs = [
        pl.BlockSpec((1, L, F), lambda b, l: (b, 0, 0)),   # x: one batch element, resident over l
        bspec((F, D)),                                      # win
        bspec((L, D)),                                      # pe + in_proj bias
        lspec((H, D, hd)), lspec((H, 1, hd)),               # wq, bq
        lspec((H, D, hd)), lspec((H, 1, hd)),               # wk, bk
        lspec((H, D, hd)), lspec((H, 1, hd)),               # wv, bv
        lspec((H, hd, D)), lspec((1, D)),                   # wo, bo
        lspec((1, D)), lspec((1, D)),                       # ln1 w/b
        lspec((D, FF)), lspec((1, FF)),                     # w1, b1
        lspec((FF, D)), lspec((1, D)),                      # w2, b2
        lspec((1, D)), lspec((1, D)),                       # ln2 w/b
    ]
    out_spec = pl.BlockSpec((1, L, D), lambda b, l: (b, 0, 0))   # same block across layer axis

    # Advisory cost hint for XLA's scheduler around the custom call.
    flops = int(B * (2 * L * F * D + NL * (8 * L * D * D + 4 * L * L * D + 4 * L * D * FF)))
    transcendentals = int(B * NL * (H * L * L + 2 * L))
    weight_bytes = sum(int(a.size) * a.dtype.itemsize
                       for a in (win, wq, wk, wv, bq, bk, bv, wo, bo,
                                 ln1w, ln1b, w1, b1, w2, b2, ln2w, ln2b))
    bytes_accessed = int(x.size * x.dtype.itemsize + B * L * D * 4
                         + peb.size * 4 + B * weight_bytes)

    kernel = functools.partial(encoder_layer_kernel, n_head=n_head, compute_dtype=wdt)
    out = pl.pallas_call(
        kernel,
        out_shape=jax.ShapeDtypeStruct((B, L, D), jnp.float32),
        grid_spec=pltpu.PrefetchScalarGridSpec(
            num_scalar_prefetch=0,
            grid=(B, NL),
            in_specs=in_specs,
            out_specs=out_spec,
            scratch_shapes=[pltpu.VMEM((L, D), jnp.float32)],   # resident activation slab
        ),
        compiler_params=pltpu.CompilerParams(
            dimension_semantics=("parallel", "arbitrary"),
            vmem_limit_bytes=32 * 1024 * 1024,
        ),
        cost_estimate=pl.CostEstimate(flops=flops,
                                      transcendentals=transcendentals,
                                      bytes_accessed=bytes_accessed),
    )(x, win, peb, wq, bq, wk, bk, wv, bv, wo, bo,
      ln1w, ln1b, w1, b1, w2, b2, ln2w, ln2b)
    return out


# ----------------------------------------------------------------------------
# Deterministic parameter construction (PyTorch nn.Linear convention: W is (out, in))
# ----------------------------------------------------------------------------
def make_positional_encoding(max_len, d_model):
    position = jnp.arange(max_len, dtype=jnp.float32)[:, None]
    div_term = jnp.exp(jnp.arange(0, d_model, 2, dtype=jnp.float32)
                       * (-math.log(10000.0) / d_model))
    pe = jnp.zeros((max_len, d_model), dtype=jnp.float32)
    pe = pe.at[:, 0::2].set(jnp.sin(position * div_term))
    pe = pe.at[:, 1::2].set(jnp.cos(position * div_term))
    return pe


def make_params(key, input_dim, d_model, num_layers, dim_feedforward, max_len):
    def normal(k, shape, scale=0.02):
        return (scale * jax.random.normal(k, shape)).astype(jnp.float32)

    keys = jax.random.split(key, 1 + 5 * num_layers)
    params = {
        "in_proj_w": normal(keys[0], (d_model, input_dim)),
        "in_proj_b": jnp.zeros((1, d_model), jnp.float32),
        "pe": make_positional_encoding(max_len, d_model),
        "layers": [],
    }
    for i in range(num_layers):
        k = keys[1 + 5 * i: 1 + 5 * (i + 1)]
        params["layers"].append({
            "wqkv": normal(k[0], (3 * d_model, d_model)),
            "bqkv": jnp.zeros((1, 3 * d_model), jnp.float32),
            "wo":   normal(k[1], (d_model, d_model)),
            "bo":   jnp.zeros((1, d_model), jnp.float32),
            "ln1w": jnp.ones((1, d_model), jnp.float32),
            "ln1b": jnp.zeros((1, d_model), jnp.float32),
            "w1":   normal(k[2], (dim_feedforward, d_model)),
            "b1":   jnp.zeros((1, dim_feedforward), jnp.float32),
            "w2":   normal(k[3], (d_model, dim_feedforward)),
            "b2":   jnp.zeros((1, d_model), jnp.float32),
            "ln2w": jnp.ones((1, d_model), jnp.float32),
            "ln2b": jnp.zeros((1, d_model), jnp.float32),
        })
    return params


# ----------------------------------------------------------------------------
if __name__ == "__main__":
    B, L, F = 2, 8, 16            # batch, seq length, input_dim
    D, N_HEAD = 128, 2            # d_model (lane-dense), head_dim = 64
    NUM_LAYERS, DIM_FF = 3, 256
    MAX_LEN = 64

    key = jax.random.PRNGKey(0)
    kx, kp = jax.random.split(key)
    x = jax.random.normal(kx, (B, L, F), dtype=jnp.float32)
    params = make_params(kp, F, D, NUM_LAYERS, DIM_FF, MAX_LEN)

    out = trajectory_encoder_forward(x, params, n_head=N_HEAD)
    out = jax.block_until_ready(out)
    assert out.shape == (B, L, D)
    assert jnp.all(jnp.isfinite(out))
    print("KERNEL_OK")
</pallas_src>

<mosaic_0001>
module attributes {stable_mosaic.version = 11 : i64} {
  func.func @encoder_layer_kernel(%arg0: i32, %arg1: i32, %arg2: memref<1x8x16xf32, #tpu.memory_space<vmem>>, %arg3: memref<16x128xbf16, #tpu.memory_space<vmem>>, %arg4: memref<8x128xf32, #tpu.memory_space<vmem>>, %arg5: memref<1x2x128x64xbf16, #tpu.memory_space<vmem>>, %arg6: memref<1x2x1x64xf32, #tpu.memory_space<vmem>>, %arg7: memref<1x2x128x64xbf16, #tpu.memory_space<vmem>>, %arg8: memref<1x2x1x64xf32, #tpu.memory_space<vmem>>, %arg9: memref<1x2x128x64xbf16, #tpu.memory_space<vmem>>, %arg10: memref<1x2x1x64xf32, #tpu.memory_space<vmem>>, %arg11: memref<1x2x64x128xbf16, #tpu.memory_space<vmem>>, %arg12: memref<1x1x128xf32, #tpu.memory_space<vmem>>, %arg13: memref<1x1x128xf32, #tpu.memory_space<vmem>>, %arg14: memref<1x1x128xf32, #tpu.memory_space<vmem>>, %arg15: memref<1x128x256xbf16, #tpu.memory_space<vmem>>, %arg16: memref<1x1x256xf32, #tpu.memory_space<vmem>>, %arg17: memref<1x256x128xbf16, #tpu.memory_space<vmem>>, %arg18: memref<1x1x128xf32, #tpu.memory_space<vmem>>, %arg19: memref<1x1x128xf32, #tpu.memory_space<vmem>>, %arg20: memref<1x1x128xf32, #tpu.memory_space<vmem>>, %arg21: memref<1x8x128xf32, #tpu.memory_space<vmem>>, %arg22: memref<8x128xf32, #tpu.memory_space<vmem>>) attributes {dimension_semantics = [#tpu.dimension_semantics<parallel>, #tpu.dimension_semantics<arbitrary>], iteration_bounds = array<i64: 2, 3>, scalar_prefetch = 0 : i64, scratch_operands = 1 : i64, tpu.core_type = #tpu.core_type<tc>, window_params = [{transform_indices = @transform_0, window_bounds = array<i64: 1, 8, 16>}, {pipeline_mode = #tpu.pipeline_mode<synchronous>, transform_indices = @transform_1, window_bounds = array<i64: 16, 128>}, {pipeline_mode = #tpu.pipeline_mode<synchronous>, transform_indices = @transform_2, window_bounds = array<i64: 8, 128>}, {transform_indices = @transform_3, window_bounds = array<i64: 1, 2, 128, 64>}, {transform_indices = @transform_4, window_bounds = array<i64: 1, 2, 1, 64>}, {transform_indices = @transform_5, window_bounds = array<i64: 1, 2, 128, 64>}, {transform_indices = @transform_6, window_bounds = array<i64: 1, 2, 1, 64>}, {transform_indices = @transform_7, window_bounds = array<i64: 1, 2, 128, 64>}, {transform_indices = @transform_8, window_bounds = array<i64: 1, 2, 1, 64>}, {transform_indices = @transform_9, window_bounds = array<i64: 1, 2, 64, 128>}, {transform_indices = @transform_10, window_bounds = array<i64: 1, 1, 128>}, {transform_indices = @transform_11, window_bounds = array<i64: 1, 1, 128>}, {transform_indices = @transform_12, window_bounds = array<i64: 1, 1, 128>}, {transform_indices = @transform_13, window_bounds = array<i64: 1, 128, 256>}, {transform_indices = @transform_14, window_bounds = array<i64: 1, 1, 256>}, {transform_indices = @transform_15, window_bounds = array<i64: 1, 256, 128>}, {transform_indices = @transform_16, window_bounds = array<i64: 1, 1, 128>}, {transform_indices = @transform_17, window_bounds = array<i64: 1, 1, 128>}, {transform_indices = @transform_18, window_bounds = array<i64: 1, 1, 128>}, {transform_indices = @transform_19, window_bounds = array<i64: 1, 8, 128>}]} {
    %c0_i32 = arith.constant 0 : i32
    %0 = arith.cmpi eq, %arg1, %c0_i32 : i32
    %1 = arith.extui %0 : i1 to i32
    %c0_i32_0 = arith.constant 0 : i32
    %2 = arith.cmpi ne, %1, %c0_i32_0 : i32
    scf.if %2 {
      %c0_116 = arith.constant 0 : index
      %c0_117 = arith.constant 0 : index
      %c0_118 = arith.constant 0 : index
      %170 = vector.load %arg2[%c0_116, %c0_117, %c0_118] : memref<1x8x16xf32, #tpu.memory_space<vmem>>, vector<1x8x16xf32>
      %171 = vector.shape_cast %170 : vector<1x8x16xf32> to vector<8x16xf32>
      %172 = arith.truncf %171 : vector<8x16xf32> to vector<8x16xbf16>
      %c0_119 = arith.constant 0 : index
      %c0_120 = arith.constant 0 : index
      %173 = vector.load %arg3[%c0_119, %c0_120] : memref<16x128xbf16, #tpu.memory_space<vmem>>, vector<16x128xbf16>
      %cst_121 = arith.constant dense<0.000000e+00> : vector<8x128xf32>
      %174 = tpu.matmul %172, %173, %cst_121 {dimension_numbers = #tpu.dot_dimension_numbers<[1], [0], [0], [1], [0, 0, 1, 1], [], []>} : vector<8x16xbf16>, vector<16x128xbf16>, vector<8x128xf32> -> vector<8x128xf32>
      %c0_122 = arith.constant 0 : index
      %c0_123 = arith.constant 0 : index
      %175 = vector.load %arg4[%c0_122, %c0_123] : memref<8x128xf32, #tpu.memory_space<vmem>>, vector<8x128xf32>
      %176 = arith.addf %174, %175 : vector<8x128xf32>
      %c0_124 = arith.constant 0 : index
      %c0_125 = arith.constant 0 : index
      %177 = vector.load %arg22[%c0_124, %c0_125] : memref<8x128xf32, #tpu.memory_space<vmem>>, vector<8x128xf32>
      tpu.vector_store %arg22[%c0_124, %c0_125], %176 {strides = array<i32>} : memref<8x128xf32, #tpu.memory_space<vmem>>, vector<8x128xf32>,
    } else {
    }
    %c0 = arith.constant 0 : index
    %c0_1 = arith.constant 0 : index
    %3 = vector.load %arg22[%c0, %c0_1] : memref<8x128xf32, #tpu.memory_space<vmem>>, vector<8x128xf32>
    %4 = arith.truncf %3 : vector<8x128xf32> to vector<8x128xbf16>
    %cst = arith.constant 0.000000e+00 : f32
    %5 = vector.broadcast %cst : f32 to vector<8x128xf32>
    %c0_2 = arith.constant 0 : index
    %c0_3 = arith.constant 0 : index
    %c0_4 = arith.constant 0 : index
    %c0_5 = arith.constant 0 : index
    %6 = vector.load %arg5[%c0_2, %c0_3, %c0_4, %c0_5] : memref<1x2x128x64xbf16, #tpu.memory_space<vmem>>, vector<1x1x128x64xbf16>
    %7 = vector.shape_cast %6 : vector<1x1x128x64xbf16> to vector<128x64xbf16>
    %cst_6 = arith.constant dense<0.000000e+00> : vector<8x64xf32>
    %8 = tpu.matmul %4, %7, %cst_6 {dimension_numbers = #tpu.dot_dimension_numbers<[1], [0], [0], [1], [0, 0, 1, 1], [], []>} : vector<8x128xbf16>, vector<128x64xbf16>, vector<8x64xf32> -> vector<8x64xf32>
    %c0_7 = arith.constant 0 : index
    %c0_8 = arith.constant 0 : index
    %c0_9 = arith.constant 0 : index
    %c0_10 = arith.constant 0 : index
    %9 = vector.load %arg6[%c0_7, %c0_8, %c0_9, %c0_10] : memref<1x2x1x64xf32, #tpu.memory_space<vmem>>, vector<1x1x1x64xf32>
    %10 = vector.shape_cast %9 : vector<1x1x1x64xf32> to vector<1x64xf32>
    %11 = vector.broadcast %10 : vector<1x64xf32> to vector<8x64xf32>
    %12 = arith.addf %8, %11 : vector<8x64xf32>
    %c0_11 = arith.constant 0 : index
    %c0_12 = arith.constant 0 : index
    %c0_13 = arith.constant 0 : index
    %c0_14 = arith.constant 0 : index
    %13 = vector.load %arg7[%c0_11, %c0_12, %c0_13, %c0_14] : memref<1x2x128x64xbf16, #tpu.memory_space<vmem>>, vector<1x1x128x64xbf16>
    %14 = vector.shape_cast %13 : vector<1x1x128x64xbf16> to vector<128x64xbf16>
    %cst_15 = arith.constant dense<0.000000e+00> : vector<8x64xf32>
    %15 = tpu.matmul %4, %14, %cst_15 {dimension_numbers = #tpu.dot_dimension_numbers<[1], [0], [0], [1], [0, 0, 1, 1], [], []>} : vector<8x128xbf16>, vector<128x64xbf16>, vector<8x64xf32> -> vector<8x64xf32>
    %c0_16 = arith.constant 0 : index
    %c0_17 = arith.constant 0 : index
    %c0_18 = arith.constant 0 : index
    %c0_19 = arith.constant 0 : index
    %16 = vector.load %arg8[%c0_16, %c0_17, %c0_18, %c0_19] : memref<1x2x1x64xf32, #tpu.memory_space<vmem>>, vector<1x1x1x64xf32>
    %17 = vector.shape_cast %16 : vector<1x1x1x64xf32> to vector<1x64xf32>
    %18 = vector.broadcast %17 : vector<1x64xf32> to vector<8x64xf32>
    %19 = arith.addf %15, %18 : vector<8x64xf32>
    %c0_20 = arith.constant 0 : index
    %c0_21 = arith.constant 0 : index
    %c0_22 = arith.constant 0 : index
    %c0_23 = arith.constant 0 : index
    %20 = vector.load %arg9[%c0_20, %c0_21, %c0_22, %c0_23] : memref<1x2x128x64xbf16, #tpu.memory_space<vmem>>, vector<1x1x128x64xbf16>
    %21 = vector.shape_cast %20 : vector<1x1x128x64xbf16> to vector<128x64xbf16>
    %cst_24 = arith.constant dense<0.000000e+00> : vector<8x64xf32>
    %22 = tpu.matmul %4, %21, %cst_24 {dimension_numbers = #tpu.dot_dimension_numbers<[1], [0], [0], [1], [0, 0, 1, 1], [], []>} : vector<8x128xbf16>, vector<128x64xbf16>, vector<8x64xf32> -> vector<8x64xf32>
    %c0_25 = arith.constant 0 : index
    %c0_26 = arith.constant 0 : index
    %c0_27 = arith.constant 0 : index
    %c0_28 = arith.constant 0 : index
    %23 = vector.load %arg10[%c0_25, %c0_26, %c0_27, %c0_28] : memref<1x2x1x64xf32, #tpu.memory_space<vmem>>, vector<1x1x1x64xf32>
    %24 = vector.shape_cast %23 : vector<1x1x1x64xf32> to vector<1x64xf32>
    %25 = vector.broadcast %24 : vector<1x64xf32> to vector<8x64xf32>
    %26 = arith.addf %22, %25 : vector<8x64xf32>
    %27 = arith.truncf %12 : vector<8x64xf32> to vector<8x64xbf16>
    %28 = arith.truncf %19 : vector<8x64xf32> to vector<8x64xbf16>
    "tpu.trace_start"() <{level = 10 : i32, message = "qd,kd->qk"}> : () -> ()
    %cst_29 = arith.constant dense<0.000000e+00> : vector<8x8xf32>
    %29 = tpu.matmul %27, %28, %cst_29 {dimension_numbers = #tpu.dot_dimension_numbers<[1], [1], [0], [0], [0, 0, 1, 0], [], []>} : vector<8x64xbf16>, vector<8x64xbf16>, vector<8x8xf32> -> vector<8x8xf32>
    "tpu.trace_stop"() : () -> ()
    %cst_30 = arith.constant dense<0xFF800000> : vector<8xf32>
    %30 = vector.multi_reduction <maximumf>, %29, %cst_30 [1] : vector<8x8xf32> to vector<8xf32>
    %31 = vector.shape_cast %30 : vector<8xf32> to vector<8x1xf32>
    %32 = vector.broadcast %31 : vector<8x1xf32> to vector<8x8xf32>
    %33 = arith.subf %29, %32 : vector<8x8xf32>
    %34 = math.exp %33 : vector<8x8xf32>
    %cst_31 = arith.constant dense<0.000000e+00> : vector<8xf32>
    %35 = vector.multi_reduction <add>, %34, %cst_31 [1] : vector<8x8xf32> to vector<8xf32>
    %36 = vector.shape_cast %35 : vector<8xf32> to vector<8x1xf32>
    %37 = tpu.reciprocal %36 {approx = true} : vector<8x1xf32> -> vector<8x1xf32>
    %38 = vector.broadcast %37 : vector<8x1xf32> to vector<8x8xf32>
    %39 = arith.mulf %34, %38 : vector<8x8xf32>
    %40 = arith.truncf %39 : vector<8x8xf32> to vector<8x8xbf16>
    %41 = arith.truncf %26 : vector<8x64xf32> to vector<8x64xbf16>
    %cst_32 = arith.constant dense<0.000000e+00> : vector<8x64xf32>
    %42 = tpu.matmul %40, %41, %cst_32 {dimension_numbers = #tpu.dot_dimension_numbers<[1], [0], [0], [1], [0, 0, 1, 1], [], []>} : vector<8x8xbf16>, vector<8x64xbf16>, vector<8x64xf32> -> vector<8x64xf32>
    %43 = arith.truncf %42 : vector<8x64xf32> to vector<8x64xbf16>
    %c0_33 = arith.constant 0 : index
    %c0_34 = arith.constant 0 : index
    %c0_35 = arith.constant 0 : index
    %c0_36 = arith.constant 0 : index
    %44 = vector.load %arg11[%c0_33, %c0_34, %c0_35, %c0_36] : memref<1x2x64x128xbf16, #tpu.memory_space<vmem>>, vector<1x1x64x128xbf16>
    %45 = vector.shape_cast %44 : vector<1x1x64x128xbf16> to vector<64x128xbf16>
    %cst_37 = arith.constant dense<0.000000e+00> : vector<8x128xf32>
    %46 = tpu.matmul %43, %45, %cst_37 {dimension_numbers = #tpu.dot_dimension_numbers<[1], [0], [0], [1], [0, 0, 1, 1], [], []>} : vector<8x64xbf16>, vector<64x128xbf16>, vector<8x128xf32> -> vector<8x128xf32>
    %47 = arith.addf %5, %46 : vector<8x128xf32>
    %c0_38 = arith.constant 0 : index
    %c1 = arith.constant 1 : index
    %c0_39 = arith.constant 0 : index
    %c0_40 = arith.constant 0 : index
    %48 = vector.load %arg5[%c0_38, %c1, %c0_39, %c0_40] : memref<1x2x128x64xbf16, #tpu.memory_space<vmem>>, vector<1x1x128x64xbf16>
    %49 = vector.shape_cast %48 : vector<1x1x128x64xbf16> to vector<128x64xbf16>
    %cst_41 = arith.constant dense<0.000000e+00> : vector<8x64xf32>
    %50 = tpu.matmul %4, %49, %cst_41 {dimension_numbers = #tpu.dot_dimension_numbers<[1], [0], [0], [1], [0, 0, 1, 1], [], []>} : vector<8x128xbf16>, vector<128x64xbf16>, vector<8x64xf32> -> vector<8x64xf32>
    %c0_42 = arith.constant 0 : index
    %c1_43 = arith.constant 1 : index
    %c0_44 = arith.constant 0 : index
    %c0_45 = arith.constant 0 : index
    %51 = vector.load %arg6[%c0_42, %c1_43, %c0_44, %c0_45] : memref<1x2x1x64xf32, #tpu.memory_space<vmem>>, vector<1x1x1x64xf32>
    %52 = vector.shape_cast %51 : vector<1x1x1x64xf32> to vector<1x64xf32>
    %53 = vector.broadcast %52 : vector<1x64xf32> to vector<8x64xf32>
    %54 = arith.addf %50, %53 : vector<8x64xf32>
    %c0_46 = arith.constant 0 : index
    %c1_47 = arith.constant 1 : index
    %c0_48 = arith.constant 0 : index
    %c0_49 = arith.constant 0 : index
    %55 = vector.load %arg7[%c0_46, %c1_47, %c0_48, %c0_49] : memref<1x2x128x64xbf16, #tpu.memory_space<vmem>>, vector<1x1x128x64xbf16>
    %56 = vector.shape_cast %55 : vector<1x1x128x64xbf16> to vector<128x64xbf16>
    %cst_50 = arith.constant dense<0.000000e+00> : vector<8x64xf32>
    %57 = tpu.matmul %4, %56, %cst_50 {dimension_numbers = #tpu.dot_dimension_numbers<[1], [0], [0], [1], [0, 0, 1, 1], [], []>} : vector<8x128xbf16>, vector<128x64xbf16>, vector<8x64xf32> -> vector<8x64xf32>
    %c0_51 = arith.constant 0 : index
    %c1_52 = arith.constant 1 : index
    %c0_53 = arith.constant 0 : index
    %c0_54 = arith.constant 0 : index
    %58 = vector.load %arg8[%c0_51, %c1_52, %c0_53, %c0_54] : memref<1x2x1x64xf32, #tpu.memory_space<vmem>>, vector<1x1x1x64xf32>
    %59 = vector.shape_cast %58 : vector<1x1x1x64xf32> to vector<1x64xf32>
    %60 = vector.broadcast %59 : vector<1x64xf32> to vector<8x64xf32>
    %61 = arith.addf %57, %60 : vector<8x64xf32>
    %c0_55 = arith.constant 0 : index
    %c1_56 = arith.constant 1 : index
    %c0_57 = arith.constant 0 : index
    %c0_58 = arith.constant 0 : index
    %62 = vector.load %arg9[%c0_55, %c1_56, %c0_57, %c0_58] : memref<1x2x128x64xbf16, #tpu.memory_space<vmem>>, vector<1x1x128x64xbf16>
    %63 = vector.shape_cast %62 : vector<1x1x128x64xbf16> to vector<128x64xbf16>
    %cst_59 = arith.constant dense<0.000000e+00> : vector<8x64xf32>
    %64 = tpu.matmul %4, %63, %cst_59 {dimension_numbers = #tpu.dot_dimension_numbers<[1], [0], [0], [1], [0, 0, 1, 1], [], []>} : vector<8x128xbf16>, vector<128x64xbf16>, vector<8x64xf32> -> vector<8x64xf32>
    %c0_60 = arith.constant 0 : index
    %c1_61 = arith.constant 1 : index
    %c0_62 = arith.constant 0 : index
    %c0_63 = arith.constant 0 : index
    %65 = vector.load %arg10[%c0_60, %c1_61, %c0_62, %c0_63] : memref<1x2x1x64xf32, #tpu.memory_space<vmem>>, vector<1x1x1x64xf32>
    %66 = vector.shape_cast %65 : vector<1x1x1x64xf32> to vector<1x64xf32>
    %67 = vector.broadcast %66 : vector<1x64xf32> to vector<8x64xf32>
    %68 = arith.addf %64, %67 : vector<8x64xf32>
    %69 = arith.truncf %54 : vector<8x64xf32> to vector<8x64xbf16>
    %70 = arith.truncf %61 : vector<8x64xf32> to vector<8x64xbf16>
    "tpu.trace_start"() <{level = 10 : i32, message = "qd,kd->qk"}> : () -> ()
    %cst_64 = arith.constant dense<0.000000e+00> : vector<8x8xf32>
    %71 = tpu.matmul %69, %70, %cst_64 {dimension_numbers = #tpu.dot_dimension_numbers<[1], [1], [0], [0], [0, 0, 1, 0], [], []>} : vector<8x64xbf16>, vector<8x64xbf16>, vector<8x8xf32> -> vector<8x8xf32>
    "tpu.trace_stop"() : () -> ()
    %cst_65 = arith.constant dense<0xFF800000> : vector<8xf32>
    %72 = vector.multi_reduction <maximumf>, %71, %cst_65 [1] : vector<8x8xf32> to vector<8xf32>
    %73 = vector.shape_cast %72 : vector<8xf32> to vector<8x1xf32>
    %74 = vector.broadcast %73 : vector<8x1xf32> to vector<8x8xf32>
    %75 = arith.subf %71, %74 : vector<8x8xf32>
    %76 = math.exp %75 : vector<8x8xf32>
    %cst_66 = arith.constant dense<0.000000e+00> : vector<8xf32>
    %77 = vector.multi_reduction <add>, %76, %cst_66 [1] : vector<8x8xf32> to vector<8xf32>
    %78 = vector.shape_cast %77 : vector<8xf32> to vector<8x1xf32>
    %79 = tpu.reciprocal %78 {approx = true} : vector<8x1xf32> -> vector<8x1xf32>
    %80 = vector.broadcast %79 : vector<8x1xf32> to vector<8x8xf32>
    %81 = arith.mulf %76, %80 : vector<8x8xf32>
    %82 = arith.truncf %81 : vector<8x8xf32> to vector<8x8xbf16>
    %83 = arith.truncf %68 : vector<8x64xf32> to vector<8x64xbf16>
    %cst_67 = arith.constant dense<0.000000e+00> : vector<8x64xf32>
    %84 = tpu.matmul %82, %83, %cst_67 {dimension_numbers = #tpu.dot_dimension_numbers<[1], [0], [0], [1], [0, 0, 1, 1], [], []>} : vector<8x8xbf16>, vector<8x64xbf16>, vector<8x64xf32> -> vector<8x64xf32>
    %85 = arith.truncf %84 : vector<8x64xf32> to vector<8x64xbf16>
    %c0_68 = arith.constant 0 : index
    %c1_69 = arith.constant 1 : index
    %c0_70 = arith.constant 0 : index
    %c0_71 = arith.constant 0 : index
    %86 = vector.load %arg11[%c0_68, %c1_69, %c0_70, %c0_71] : memref<1x2x64x128xbf16, #tpu.memory_space<vmem>>, vector<1x1x64x128xbf16>
    %87 = vector.shape_cast %86 : vector<1x1x64x128xbf16> to vector<64x128xbf16>
    %cst_72 = arith.constant dense<0.000000e+00> : vector<8x128xf32>
    %88 = tpu.matmul %85, %87, %cst_72 {dimension_numbers = #tpu.dot_dimension_numbers<[1], [0], [0], [1], [0, 0, 1, 1], [], []>} : vector<8x64xbf16>, vector<64x128xbf16>, vector<8x128xf32> -> vector<8x128xf32>
    %89 = arith.addf %47, %88 : vector<8x128xf32>
    %c0_73 = arith.constant 0 : index
    %c0_74 = arith.constant 0 : index
    %c0_75 = arith.constant 0 : index
    %90 = vector.load %arg12[%c0_73, %c0_74, %c0_75] : memref<1x1x128xf32, #tpu.memory_space<vmem>>, vector<1x1x128xf32>
    %91 = vector.shape_cast %90 : vector<1x1x128xf32> to vector<1x128xf32>
    %92 = vector.broadcast %91 : vector<1x128xf32> to vector<8x128xf32>
    %93 = arith.addf %89, %92 : vector<8x128xf32>
    %94 = arith.addf %3, %93 : vector<8x128xf32>
    %c0_76 = arith.constant 0 : index
    %c0_77 = arith.constant 0 : index
    %c0_78 = arith.constant 0 : index
    %95 = vector.load %arg13[%c0_76, %c0_77, %c0_78] : memref<1x1x128xf32, #tpu.memory_space<vmem>>, vector<1x1x128xf32>
    %96 = vector.shape_cast %95 : vector<1x1x128xf32> to vector<1x128xf32>
    %c0_79 = arith.constant 0 : index
    %c0_80 = arith.constant 0 : index
    %c0_81 = arith.constant 0 : index
    %97 = vector.load %arg14[%c0_79, %c0_80, %c0_81] : memref<1x1x128xf32, #tpu.memory_space<vmem>>, vector<1x1x128xf32>
    %98 = vector.shape_cast %97 : vector<1x1x128xf32> to vector<1x128xf32>
    %cst_82 = arith.constant dense<0.000000e+00> : vector<8xf32>
    %99 = vector.multi_reduction <add>, %94, %cst_82 [1] : vector<8x128xf32> to vector<8xf32>
    %100 = vector.shape_cast %99 : vector<8xf32> to vector<8x1xf32>
    %cst_83 = arith.constant 1.280000e+02 : f32
    %101 = vector.broadcast %cst_83 : f32 to vector<8x1xf32>
    %102 = arith.divf %100, %101 : vector<8x1xf32>
    %103 = arith.mulf %94, %94 : vector<8x128xf32>
    %cst_84 = arith.constant dense<0.000000e+00> : vector<8xf32>
    %104 = vector.multi_reduction <add>, %103, %cst_84 [1] : vector<8x128xf32> to vector<8xf32>
    %105 = vector.shape_cast %104 : vector<8xf32> to vector<8x1xf32>
    %cst_85 = arith.constant 1.280000e+02 : f32
    %106 = vector.broadcast %cst_85 : f32 to vector<8x1xf32>
    %107 = arith.divf %105, %106 : vector<8x1xf32>
    %108 = arith.mulf %102, %102 : vector<8x1xf32>
    %109 = arith.subf %107, %108 : vector<8x1xf32>
    %110 = vector.broadcast %102 : vector<8x1xf32> to vector<8x128xf32>
    %111 = arith.subf %94, %110 : vector<8x128xf32>
    %cst_86 = arith.constant 9.99999974E-6 : f32
    %112 = vector.broadcast %cst_86 : f32 to vector<8x1xf32>
    %113 = arith.addf %109, %112 : vector<8x1xf32>
    %114 = math.rsqrt %113 : vector<8x1xf32>
    %115 = vector.broadcast %114 : vector<8x1xf32> to vector<8x128xf32>
    %116 = arith.mulf %111, %115 : vector<8x128xf32>
    %117 = vector.broadcast %96 : vector<1x128xf32> to vector<8x128xf32>
    %118 = arith.mulf %116, %117 : vector<8x128xf32>
    %119 = vector.broadcast %98 : vector<1x128xf32> to vector<8x128xf32>
    %120 = arith.addf %118, %119 : vector<8x128xf32>
    %121 = arith.truncf %120 : vector<8x128xf32> to vector<8x128xbf16>
    %c0_87 = arith.constant 0 : index
    %c0_88 = arith.constant 0 : index
    %c0_89 = arith.constant 0 : index
    %122 = vector.load %arg15[%c0_87, %c0_88, %c0_89] : memref<1x128x256xbf16, #tpu.memory_space<vmem>>, vector<1x128x256xbf16>
    %123 = vector.shape_cast %122 : vector<1x128x256xbf16> to vector<128x256xbf16>
    %cst_90 = arith.constant dense<0.000000e+00> : vector<8x256xf32>
    %124 = tpu.matmul %121, %123, %cst_90 {dimension_numbers = #tpu.dot_dimension_numbers<[1], [0], [0], [1], [0, 0, 1, 1], [], []>} : vector<8x128xbf16>, vector<128x256xbf16>, vector<8x256xf32> -> vector<8x256xf32>
    %c0_91 = arith.constant 0 : index
    %c0_92 = arith.constant 0 : index
    %c0_93 = arith.constant 0 : index
    %125 = vector.load %arg16[%c0_91, %c0_92, %c0_93] : memref<1x1x256xf32, #tpu.memory_space<vmem>>, vector<1x1x256xf32>
    %126 = vector.shape_cast %125 : vector<1x1x256xf32> to vector<1x256xf32>
    %127 = vector.broadcast %126 : vector<1x256xf32> to vector<8x256xf32>
    %128 = arith.addf %124, %127 : vector<8x256xf32>
    %cst_94 = arith.constant 0.000000e+00 : f32
    %129 = vector.broadcast %cst_94 : f32 to vector<8x256xf32>
    %130 = arith.maximumf %128, %129 : vector<8x256xf32>
    %131 = arith.truncf %130 : vector<8x256xf32> to vector<8x256xbf16>
    %c0_95 = arith.constant 0 : index
    %c0_96 = arith.constant 0 : index
    %c0_97 = arith.constant 0 : index
    %132 = vector.load %arg17[%c0_95, %c0_96, %c0_97] : memref<1x256x128xbf16, #tpu.memory_space<vmem>>, vector<1x256x128xbf16>
    %133 = vector.shape_cast %132 : vector<1x256x128xbf16> to vector<256x128xbf16>
    %cst_98 = arith.constant dense<0.000000e+00> : vector<8x128xf32>
    %134 = tpu.matmul %131, %133, %cst_98 {dimension_numbers = #tpu.dot_dimension_numbers<[1], [0], [0], [1], [0, 0, 1, 1], [], []>} : vector<8x256xbf16>, vector<256x128xbf16>, vector<8x128xf32> -> vector<8x128xf32>
    %c0_99 = arith.constant 0 : index
    %c0_100 = arith.constant 0 : index
    %c0_101 = arith.constant 0 : index
    %135 = vector.load %arg18[%c0_99, %c0_100, %c0_101] : memref<1x1x128xf32, #tpu.memory_space<vmem>>, vector<1x1x128xf32>
    %136 = vector.shape_cast %135 : vector<1x1x128xf32> to vector<1x128xf32>
    %137 = vector.broadcast %136 : vector<1x128xf32> to vector<8x128xf32>
    %138 = arith.addf %134, %137 : vector<8x128xf32>
    %139 = arith.addf %120, %138 : vector<8x128xf32>
    %c0_102 = arith.constant 0 : index
    %c0_103 = arith.constant 0 : index
    %c0_104 = arith.constant 0 : index
    %140 = vector.load %arg19[%c0_102, %c0_103, %c0_104] : memref<1x1x128xf32, #tpu.memory_space<vmem>>, vector<1x1x128xf32>
    %141 = vector.shape_cast %140 : vector<1x1x128xf32> to vector<1x128xf32>
    %c0_105 = arith.constant 0 : index
    %c0_106 = arith.constant 0 : index
    %c0_107 = arith.constant 0 : index
    %142 = vector.load %arg20[%c0_105, %c0_106, %c0_107] : memref<1x1x128xf32, #tpu.memory_space<vmem>>, vector<1x1x128xf32>
    %143 = vector.shape_cast %142 : vector<1x1x128xf32> to vector<1x128xf32>
    %cst_108 = arith.constant dense<0.000000e+00> : vector<8xf32>
    %144 = vector.multi_reduction <add>, %139, %cst_108 [1] : vector<8x128xf32> to vector<8xf32>
    %145 = vector.shape_cast %144 : vector<8xf32> to vector<8x1xf32>
    %cst_109 = arith.constant 1.280000e+02 : f32
    %146 = vector.broadcast %cst_109 : f32 to vector<8x1xf32>
    %147 = arith.divf %145, %146 : vector<8x1xf32>
    %148 = arith.mulf %139, %139 : vector<8x128xf32>
    %cst_110 = arith.constant dense<0.000000e+00> : vector<8xf32>
    %149 = vector.multi_reduction <add>, %148, %cst_110 [1] : vector<8x128xf32> to vector<8xf32>
    %150 = vector.shape_cast %149 : vector<8xf32> to vector<8x1xf32>
    %cst_111 = arith.constant 1.280000e+02 : f32
    %151 = vector.broadcast %cst_111 : f32 to vector<8x1xf32>
    %152 = arith.divf %150, %151 : vector<8x1xf32>
    %153 = arith.mulf %147, %147 : vector<8x1xf32>
    %154 = arith.subf %152, %153 : vector<8x1xf32>
    %155 = vector.broadcast %147 : vector<8x1xf32> to vector<8x128xf32>
    %156 = arith.subf %139, %155 : vector<8x128xf32>
    %cst_112 = arith.constant 9.99999974E-6 : f32
    %157 = vector.broadcast %cst_112 : f32 to vector<8x1xf32>
    %158 = arith.addf %154, %157 : vector<8x1xf32>
    %159 = math.rsqrt %158 : vector<8x1xf32>
    %160 = vector.broadcast %159 : vector<8x1xf32> to vector<8x128xf32>
    %161 = arith.mulf %156, %160 : vector<8x128xf32>
    %162 = vector.broadcast %141 : vector<1x128xf32> to vector<8x128xf32>
    %163 = arith.mulf %161, %162 : vector<8x128xf32>
    %164 = vector.broadcast %143 : vector<1x128xf32> to vector<8x128xf32>
    %165 = arith.addf %163, %164 : vector<8x128xf32>
    %c0_113 = arith.constant 0 : index
    %c0_114 = arith.constant 0 : index
    %166 = vector.load %arg22[%c0_113, %c0_114] : memref<8x128xf32, #tpu.memory_space<vmem>>, vector<8x128xf32>
    tpu.vector_store %arg22[%c0_113, %c0_114], %165 {strides = array<i32>} : memref<8x128xf32, #tpu.memory_space<vmem>>, vector<8x128xf32>,
    %c2_i32 = arith.constant 2 : i32
    %167 = arith.cmpi eq, %arg1, %c2_i32 : i32
    %168 = arith.extui %167 : i1 to i32
    %c0_i32_115 = arith.constant 0 : i32
    %169 = arith.cmpi ne, %168, %c0_i32_115 : i32
    scf.if %169 {
      %c0_116 = arith.constant 0 : index
      %c0_117 = arith.constant 0 : index
      %c0_118 = arith.constant 0 : index
      %170 = vector.load %arg21[%c0_116, %c0_117, %c0_118] : memref<1x8x128xf32, #tpu.memory_space<vmem>>, vector<1x8x128xf32>
      %171 = vector.shape_cast %170 : vector<1x8x128xf32> to vector<8x128xf32>
      %172 = vector.shape_cast %165 : vector<8x128xf32> to vector<1x8x128xf32>
      tpu.vector_store %arg21[%c0_116, %c0_117, %c0_118], %172 {strides = array<i32>} : memref<1x8x128xf32, #tpu.memory_space<vmem>>, vector<1x8x128xf32>,
    } else {
    }
    return
  }
  func.func @transform_0(%arg0: i32, %arg1: i32) -> (i32, i32, i32) {
    %c0_i32 = arith.constant 0 : i32
    %c0_i32_0 = arith.constant 0 : i32
    %c0_i32_1 = arith.constant 0 : i32
    return %arg0, %c0_i32, %c0_i32_0 : i32, i32, i32
  }
  func.func @transform_1(%arg0: i32, %arg1: i32) -> (i32, i32) {
    %c0_i32 = arith.constant 0 : i32
    %c0_i32_0 = arith.constant 0 : i32
    %c0_i32_1 = arith.constant 0 : i32
    return %c0_i32, %c0_i32_0 : i32, i32
  }
  func.func @transform_2(%arg0: i32, %arg1: i32) -> (i32, i32) {
    %c0_i32 = arith.constant 0 : i32
    %c0_i32_0 = arith.constant 0 : i32
    %c0_i32_1 = arith.constant 0 : i32
    return %c0_i32, %c0_i32_0 : i32, i32
  }
  func.func @transform_3(%arg0: i32, %arg1: i32) -> (i32, i32, i32, i32) {
    %c0_i32 = arith.constant 0 : i32
    %c0_i32_0 = arith.constant 0 : i32
    %c0_i32_1 = arith.constant 0 : i32
    %c0_i32_2 = arith.constant 0 : i32
    return %arg1, %c0_i32, %c0_i32_0, %c0_i32_1 : i32, i32, i32, i32
  }
  func.func @transform_4(%arg0: i32, %arg1: i32) -> (i32, i32, i32, i32) {
    %c0_i32 = arith.constant 0 : i32
    %c0_i32_0 = arith.constant 0 : i32
    %c0_i32_1 = arith.constant 0 : i32
    %c0_i32_2 = arith.constant 0 : i32
    return %arg1, %c0_i32, %c0_i32_0, %c0_i32_1 : i32, i32, i32, i32
  }
  func.func @transform_5(%arg0: i32, %arg1: i32) -> (i32, i32, i32, i32) {
    %c0_i32 = arith.constant 0 : i32
    %c0_i32_0 = arith.constant 0 : i32
    %c0_i32_1 = arith.constant 0 : i32
    %c0_i32_2 = arith.constant 0 : i32
    return %arg1, %c0_i32, %c0_i32_0, %c0_i32_1 : i32, i32, i32, i32
  }
  func.func @transform_6(%arg0: i32, %arg1: i32) -> (i32, i32, i32, i32) {
    %c0_i32 = arith.constant 0 : i32
    %c0_i32_0 = arith.constant 0 : i32
    %c0_i32_1 = arith.constant 0 : i32
    %c0_i32_2 = arith.constant 0 : i32
    return %arg1, %c0_i32, %c0_i32_0, %c0_i32_1 : i32, i32, i32, i32
  }
  func.func @transform_7(%arg0: i32, %arg1: i32) -> (i32, i32, i32, i32) {
    %c0_i32 = arith.constant 0 : i32
    %c0_i32_0 = arith.constant 0 : i32
    %c0_i32_1 = arith.constant 0 : i32
    %c0_i32_2 = arith.constant 0 : i32
    return %arg1, %c0_i32, %c0_i32_0, %c0_i32_1 : i32, i32, i32, i32
  }
  func.func @transform_8(%arg0: i32, %arg1: i32) -> (i32, i32, i32, i32) {
    %c0_i32 = arith.constant 0 : i32
    %c0_i32_0 = arith.constant 0 : i32
    %c0_i32_1 = arith.constant 0 : i32
    %c0_i32_2 = arith.constant 0 : i32
    return %arg1, %c0_i32, %c0_i32_0, %c0_i32_1 : i32, i32, i32, i32
  }
  func.func @transform_9(%arg0: i32, %arg1: i32) -> (i32, i32, i32, i32) {
    %c0_i32 = arith.constant 0 : i32
    %c0_i32_0 = arith.constant 0 : i32
    %c0_i32_1 = arith.constant 0 : i32
    %c0_i32_2 = arith.constant 0 : i32
    return %arg1, %c0_i32, %c0_i32_0, %c0_i32_1 : i32, i32, i32, i32
  }
  func.func @transform_10(%arg0: i32, %arg1: i32) -> (i32, i32, i32) {
    %c0_i32 = arith.constant 0 : i32
    %c0_i32_0 = arith.constant 0 : i32
    %c0_i32_1 = arith.constant 0 : i32
    return %arg1, %c0_i32, %c0_i32_0 : i32, i32, i32
  }
  func.func @transform_11(%arg0: i32, %arg1: i32) -> (i32, i32, i32) {
    %c0_i32 = arith.constant 0 : i32
    %c0_i32_0 = arith.constant 0 : i32
    %c0_i32_1 = arith.constant 0 : i32
    return %arg1, %c0_i32, %c0_i32_0 : i32, i32, i32
  }
  func.func @transform_12(%arg0: i32, %arg1: i32) -> (i32, i32, i32) {
    %c0_i32 = arith.constant 0 : i32
    %c0_i32_0 = arith.constant 0 : i32
    %c0_i32_1 = arith.constant 0 : i32
    return %arg1, %c0_i32, %c0_i32_0 : i32, i32, i32
  }
  func.func @transform_13(%arg0: i32, %arg1: i32) -> (i32, i32, i32) {
    %c0_i32 = arith.constant 0 : i32
    %c0_i32_0 = arith.constant 0 : i32
    %c0_i32_1 = arith.constant 0 : i32
    return %arg1, %c0_i32, %c0_i32_0 : i32, i32, i32
  }
  func.func @transform_14(%arg0: i32, %arg1: i32) -> (i32, i32, i32) {
    %c0_i32 = arith.constant 0 : i32
    %c0_i32_0 = arith.constant 0 : i32
    %c0_i32_1 = arith.constant 0 : i32
    return %arg1, %c0_i32, %c0_i32_0 : i32, i32, i32
  }
  func.func @transform_15(%arg0: i32, %arg1: i32) -> (i32, i32, i32) {
    %c0_i32 = arith.constant 0 : i32
    %c0_i32_0 = arith.constant 0 : i32
    %c0_i32_1 = arith.constant 0 : i32
    return %arg1, %c0_i32, %c0_i32_0 : i32, i32, i32
  }
  func.func @transform_16(%arg0: i32, %arg1: i32) -> (i32, i32, i32) {
    %c0_i32 = arith.constant 0 : i32
    %c0_i32_0 = arith.constant 0 : i32
    %c0_i32_1 = arith.constant 0 : i32
    return %arg1, %c0_i32, %c0_i32_0 : i32, i32, i32
  }
  func.func @transform_17(%arg0: i32, %arg1: i32) -> (i32, i32, i32) {
    %c0_i32 = arith.constant 0 : i32
    %c0_i32_0 = arith.constant 0 : i32
    %c0_i32_1 = arith.constant 0 : i32
    return %arg1, %c0_i32, %c0_i32_0 : i32, i32, i32
  }
  func.func @transform_18(%arg0: i32, %arg1: i32) -> (i32, i32, i32) {
    %c0_i32 = arith.constant 0 : i32
    %c0_i32_0 = arith.constant 0 : i32
    %c0_i32_1 = arith.constant 0 : i32
    return %arg1, %c0_i32, %c0_i32_0 : i32, i32, i32
  }
  func.func @transform_19(%arg0: i32, %arg1: i32) -> (i32, i32, i32) {
    %c0_i32 = arith.constant 0 : i32
    %c0_i32_0 = arith.constant 0 : i32
    %c0_i32_1 = arith.constant 0 : i32
    return %arg0, %c0_i32, %c0_i32_0 : i32, i32, i32
  }
}

</mosaic_0001>

<llo_original>
// kernel: tpu_custom_call.1
$region0: #{tpu_custom_call.1}
  #allocation0 [shape = 'u32[]', space=smem, size = 0x4, offset = 0x4, fixed_abs, tag = 'smem constant byte address 0x4 - core index']
  #allocation1 [shape = 'u32[144,128]{1,0:T(1,128)}', space=vmem, size = 0x12000, scoped, tag = 'internal scratch']
  #allocation2 [shape = 'f32[8,128]{1,0:T(8,128)}', space=vmem, size = 0x1000, scoped, tag = 'scratch operand']
  %s0 = inlined_call_operand.vmem [shape: f32[2,8,16], index: 0, kind: input, shape index: {}]
  %s1 = inlined_call_operand.vmem [shape: bf16[16,128], index: 1, kind: input, shape index: {}]
  %s2 = inlined_call_operand.vmem [shape: f32[8,128], index: 2, kind: input, shape index: {}]
  %s3 = inlined_call_operand.vmem [shape: bf16[3,2,128,64], index: 3, kind: input, shape index: {}]
  %s4 = inlined_call_operand.vmem [shape: f32[3,2,1,64], index: 4, kind: input, shape index: {}]
  %s5 = inlined_call_operand.vmem [shape: bf16[3,2,128,64], index: 5, kind: input, shape index: {}]
  %s6 = inlined_call_operand.vmem [shape: f32[3,2,1,64], index: 6, kind: input, shape index: {}]
  %s7 = inlined_call_operand.vmem [shape: bf16[3,2,128,64], index: 7, kind: input, shape index: {}]
  %s8 = inlined_call_operand.vmem [shape: f32[3,2,1,64], index: 8, kind: input, shape index: {}]
  %s9 = inlined_call_operand.vmem [shape: bf16[3,2,64,128], index: 9, kind: input, shape index: {}]
  %s10 = inlined_call_operand.vmem [shape: f32[3,1,128], index: 10, kind: input, shape index: {}]
  %s11 = inlined_call_operand.vmem [shape: f32[3,1,128], index: 11, kind: input, shape index: {}]
  %s12 = inlined_call_operand.vmem [shape: f32[3,1,128], index: 12, kind: input, shape index: {}]
  %s13 = inlined_call_operand.vmem [shape: bf16[3,128,256], index: 13, kind: input, shape index: {}]
  %s14 = inlined_call_operand.vmem [shape: f32[3,1,256], index: 14, kind: input, shape index: {}]
  %s15 = inlined_call_operand.vmem [shape: bf16[3,256,128], index: 15, kind: input, shape index: {}]
  %s16 = inlined_call_operand.vmem [shape: f32[3,1,128], index: 16, kind: input, shape index: {}]
  %s17 = inlined_call_operand.vmem [shape: f32[3,1,128], index: 17, kind: input, shape index: {}]
  %s18 = inlined_call_operand.vmem [shape: f32[3,1,128], index: 18, kind: input, shape index: {}]
  %s19 = inlined_call_operand.hbm [shape: f32[2,8,128], index: 19, kind: output, shape index: {}]
  %s20 = sld [smem:[#allocation0]]
  $region117: #{tpu_custom_call.1} parent=0
    _
  %s22 = ssub.s32 1, %s20
  %s23 = scalar_select 0, %s22, %s20
  $region1: #{tpu_custom_call.1} parent=0
    #allocation3 [shape = 'u8[8192]{0}', space=vmem, size = 0x2000, scoped, tag = 'output window, operand 0']
    #allocation4 [shape = 's32[2]{0}', space=sflag, size = 0x8, scoped, tag = 'scoped memory for tpu_custom_call.1']
    %24 = vsyncpa [#allocation4], 0
    %s25 = scalar_lea.sflag [#allocation4], 1
    %26 = vsyncpa %s25, 0
    loop: start=0, step=1, limit=8
    $region2: #{tpu_custom_call.1} parent=1 // loop_pre_header
      _
    $region3: #{tpu_custom_call.1} parent=1 // loop_header
      %s28 = sphi 0, %s32
      %p29 = scmp.ge.s32.totalorder %s28, 8
      %s35 = sphi 0, %s47
      %s36 = sphi 0, %s43
      %s37 = sphi 0, %s35
      %s38 = sphi 0, %s36
      %s39 = sphi 0, %s37
      %s40 = sphi 0, %s38
      %s50 = sphi 0, %s52
      %s53 = sphi 0, %s50
      %s54 = sphi 0, %s53
      %s70 = sphi 0, %s54
      %s74 = sphi 0, %s74
      %s76 = sphi 0, %s74
      %s77 = sphi 0, %s76
      %s91 = sphi 0, %s77
      %s95 = sphi 0, %s95
      %s97 = sphi 0, %s95
      %s98 = sphi 0, %s97
      %s112 = sphi 0, %s98
      %s118 = sphi 0, %s120
      %s121 = sphi 0, %s118
      %s122 = sphi 0, %s121
      %s138 = sphi 0, %s122
      %s144 = sphi 0, %s146
      %s147 = sphi 0, %s144
      %s148 = sphi 0, %s147
      %s164 = sphi 0, %s148
      %s170 = sphi 0, %s172
      %s173 = sphi 0, %s170
      %s174 = sphi 0, %s173
      %s190 = sphi 0, %s174
      %s196 = sphi 0, %s198
      %s199 = sphi 0, %s196
      %s200 = sphi 0, %s199
      %s216 = sphi 0, %s200
      %s222 = sphi 0, %s224
      %s225 = sphi 0, %s222
      %s226 = sphi 0, %s225
      %s242 = sphi 0, %s226
      %s248 = sphi 0, %s250
      %s251 = sphi 0, %s248
      %s252 = sphi 0, %s251
      %s268 = sphi 0, %s252
      %s274 = sphi 0, %s276
      %s277 = sphi 0, %s274
      %s278 = sphi 0, %s277
      %s294 = sphi 0, %s278
      %s300 = sphi 0, %s302
      %s303 = sphi 0, %s300
      %s304 = sphi 0, %s303
      %s320 = sphi 0, %s304
      %s326 = sphi 0, %s328
      %s329 = sphi 0, %s326
      %s330 = sphi 0, %s329
      %s346 = sphi 0, %s330
      %s352 = sphi 0, %s354
      %s355 = sphi 0, %s352
      %s356 = sphi 0, %s355
      %s372 = sphi 0, %s356
      %s378 = sphi 0, %s380
      %s381 = sphi 0, %s378
      %s382 = sphi 0, %s381
      %s398 = sphi 0, %s382
      %s404 = sphi 0, %s406
      %s407 = sphi 0, %s404
      %s408 = sphi 0, %s407
      %s424 = sphi 0, %s408
      %s430 = sphi 0, %s432
      %s433 = sphi 0, %s430
      %s434 = sphi 0, %s433
      %s450 = sphi 0, %s434
      %s456 = sphi 0, %s458
      %s459 = sphi 0, %s456
      %s460 = sphi 0, %s459
      %s476 = sphi 0, %s460
      %s482 = sphi 0, %s484
      %s485 = sphi 0, %s482
      %s486 = sphi 0, %s485
      %s502 = sphi 0, %s486
      %s508 = sphi 0, %s510
      %s511 = sphi 0, %s508
      %s512 = sphi 0, %s511
      %s528 = sphi 0, %s512
      %s534 = sphi 0, %s536
      %s537 = sphi 0, %s534
      %s538 = sphi 0, %s537
      %s554 = sphi 0, %s538
    $region4: #{tpu_custom_call.1} parent=1 // loop_header_branch
      %31 = sbr.rel (%p29) target = $region8
    $region5: #{tpu_custom_call.1} parent=1 // loop_body
      %s33 = ssub.s32 %s28, 1
      %s34 = ssub.s32 %s28, 2
      %s41 = sadd.s32 1, %s36
      %p42 = scmp.ge.s32.totalorder %s41, 3
      %s43 = scalar_select %p42, 0, %s41
      %s44 = sadd.s32 1, %s35
      %s45 = scalar_select %p42, %s44, %s35
      %p46 = scmp.ge.s32.totalorder %s45, 2
      %s47 = scalar_select %p46, 0, %s45
      %s48 = ssub.s32 %s35, %s47
      %p49 = scmp.eq.s32.totalorder %s48, 0
      %s51 = sadd.s32 %s50, 1
      %s52 = scalar_select %p49, %s50, %s51
      %p55 = pneg %p49
      %p56 = scmp.eq.s32.totalorder %s28, 5
      %p57 = por %p55, %p56
      %p58 = scmp.ne.s32.totalorder %s50, %s53
      %p59 = scmp.eq.s32.totalorder %s28, 0
      %p60 = por %p58, %p59
      %p61 = scmp.ne.s32.totalorder %s50, %s53
      %p62 = scmp.eq.s32.totalorder %s33, 5
      %p63 = por %p61, %p62
      %p64 = scmp.ne.s32.totalorder %s53, %s54
      %p65 = scmp.eq.s32.totalorder %s33, 0
      %p66 = por %p64, %p65
      %p67 = scmp.ne.s32.totalorder %s53, %s54
      %p68 = scmp.eq.s32.totalorder %s34, 5
      %p69 = por %p67, %p68
      %p71 = scmp.ne.s32.totalorder %s54, %s70
      %p72 = scmp.eq.s32.totalorder %s34, 0
      %p73 = por %p71, %p72
      %s75 = sadd.s32 %s74, 1
      %p78 = scmp.eq.s32.totalorder %s28, 5
      %p79 = scmp.ne.s32.totalorder %s74, %s76
      %p80 = scmp.eq.s32.totalorder %s28, 0
      %p81 = por %p79, %p80
      %p82 = scmp.ne.s32.totalorder %s74, %s76
      %p83 = scmp.eq.s32.totalorder %s33, 5
      %p84 = por %p82, %p83
      %p85 = scmp.ne.s32.totalorder %s76, %s77
      %p86 = scmp.eq.s32.totalorder %s33, 0
      %p87 = por %p85, %p86
      %p88 = scmp.ne.s32.totalorder %s76, %s77
      %p89 = scmp.eq.s32.totalorder %s34, 5
      %p90 = por %p88, %p89
      %p92 = scmp.ne.s32.totalorder %s77, %s91
      %p93 = scmp.eq.s32.totalorder %s34, 0
      %p94 = por %p92, %p93
      %s96 = sadd.s32 %s95, 1
      %p99 = scmp.eq.s32.totalorder %s28, 5
      %p100 = scmp.ne.s32.totalorder %s95, %s97
      %p101 = scmp.eq.s32.totalorder %s28, 0
      %p102 = por %p100, %p101
      %p103 = scmp.ne.s32.totalorder %s95, %s97
      %p104 = scmp.eq.s32.totalorder %s33, 5
      %p105 = por %p103, %p104
      %p106 = scmp.ne.s32.totalorder %s97, %s98
      %p107 = scmp.eq.s32.totalorder %s33, 0
      %p108 = por %p106, %p107
      %p109 = scmp.ne.s32.totalorder %s97, %s98
      %p110 = scmp.eq.s32.totalorder %s34, 5
      %p111 = por %p109, %p110
      %p113 = scmp.ne.s32.totalorder %s98, %s112
      %p114 = scmp.eq.s32.totalorder %s34, 0
      %p115 = por %p113, %p114
      %s116 = ssub.s32 %s36, %s43
      %p117 = scmp.eq.s32.totalorder %s116, 0
      %s119 = sadd.s32 %s118, 1
      %s120 = scalar_select %p117, %s118, %s119
      %p123 = pneg %p117
      %p124 = scmp.eq.s32.totalorder %s28, 5
      %p125 = por %p123, %p124
      %p126 = scmp.ne.s32.totalorder %s118, %s121
      %p127 = scmp.eq.s32.totalorder %s28, 0
      %p128 = por %p126, %p127
      %p129 = scmp.ne.s32.totalorder %s118, %s121
      %p130 = scmp.eq.s32.totalorder %s33, 5
      %p131 = por %p129, %p130
      %p132 = scmp.ne.s32.totalorder %s121, %s122
      %p133 = scmp.eq.s32.totalorder %s33, 0
      %p134 = por %p132, %p133
      %p135 = scmp.ne.s32.totalorder %s121, %s122
      %p136 = scmp.eq.s32.totalorder %s34, 5
      %p137 = por %p135, %p136
      %p139 = scmp.ne.s32.totalorder %s122, %s138
      %p140 = scmp.eq.s32.totalorder %s34, 0
      %p141 = por %p139, %p140
      %s142 = ssub.s32 %s36, %s43
      %p143 = scmp.eq.s32.totalorder %s142, 0
      %s145 = sadd.s32 %s144, 1
      %s146 = scalar_select %p143, %s144, %s145
      %p149 = pneg %p143
      %p150 = scmp.eq.s32.totalorder %s28, 5
      %p151 = por %p149, %p150
      %p152 = scmp.ne.s32.totalorder %s144, %s147
      %p153 = scmp.eq.s32.totalorder %s28, 0
      %p154 = por %p152, %p153
      %p155 = scmp.ne.s32.totalorder %s144, %s147
      %p156 = scmp.eq.s32.totalorder %s33, 5
      %p157 = por %p155, %p156
      %p158 = scmp.ne.s32.totalorder %s147, %s148
      %p159 = scmp.eq.s32.totalorder %s33, 0
      %p160 = por %p158, %p159
      %p161 = scmp.ne.s32.totalorder %s147, %s148
      %p162 = scmp.eq.s32.totalorder %s34, 5
      %p163 = por %p161, %p162
      %p165 = scmp.ne.s32.totalorder %s148, %s164
      %p166 = scmp.eq.s32.totalorder %s34, 0
      %p167 = por %p165, %p166
      %s168 = ssub.s32 %s36, %s43
      %p169 = scmp.eq.s32.totalorder %s168, 0
      %s171 = sadd.s32 %s170, 1
      %s172 = scalar_select %p169, %s170, %s171
      %p175 = pneg %p169
      %p176 = scmp.eq.s32.totalorder %s28, 5
      %p177 = por %p175, %p176
      %p178 = scmp.ne.s32.totalorder %s170, %s173
      %p179 = scmp.eq.s32.totalorder %s28, 0
      %p180 = por %p178, %p179
      %p181 = scmp.ne.s32.totalorder %s170, %s173
      %p182 = scmp.eq.s32.totalorder %s33, 5
      %p183 = por %p181, %p182
      %p184 = scmp.ne.s32.totalorder %s173, %s174
      %p185 = scmp.eq.s32.totalorder %s33, 0
      %p186 = por %p184, %p185
      %p187 = scmp.ne.s32.totalorder %s173, %s174
      %p188 = scmp.eq.s32.totalorder %s34, 5
      %p189 = por %p187, %p188
      %p191 = scmp.ne.s32.totalorder %s174, %s190
      %p192 = scmp.eq.s32.totalorder %s34, 0
      %p193 = por %p191, %p192
      %s194 = ssub.s32 %s36, %s43
      %p195 = scmp.eq.s32.totalorder %s194, 0
      %s197 = sadd.s32 %s196, 1
      %s198 = scalar_select %p195, %s196, %s197
      %p201 = pneg %p195
      %p202 = scmp.eq.s32.totalorder %s28, 5
      %p203 = por %p201, %p202
      %p204 = scmp.ne.s32.totalorder %s196, %s199
      %p205 = scmp.eq.s32.totalorder %s28, 0
      %p206 = por %p204, %p205
      %p207 = scmp.ne.s32.totalorder %s196, %s199
      %p208 = scmp.eq.s32.totalorder %s33, 5
      %p209 = por %p207, %p208
      %p210 = scmp.ne.s32.totalorder %s199, %s200
      %p211 = scmp.eq.s32.totalorder %s33, 0
      %p212 = por %p210, %p211
      %p213 = scmp.ne.s32.totalorder %s199, %s200
      %p214 = scmp.eq.s32.totalorder %s34, 5
      %p215 = por %p213, %p214
      %p217 = scmp.ne.s32.totalorder %s200, %s216
      %p218 = scmp.eq.s32.totalorder %s34, 0
      %p219 = por %p217, %p218
      %s220 = ssub.s32 %s36, %s43
      %p221 = scmp.eq.s32.totalorder %s220, 0
      %s223 = sadd.s32 %s222, 1
      %s224 = scalar_select %p221, %s222, %s223
      %p227 = pneg %p221
      %p228 = scmp.eq.s32.totalorder %s28, 5
      %p229 = por %p227, %p228
      %p230 = scmp.ne.s32.totalorder %s222, %s225
      %p231 = scmp.eq.s32.totalorder %s28, 0
      %p232 = por %p230, %p231
      %p233 = scmp.ne.s32.totalorder %s222, %s225
      %p234 = scmp.eq.s32.totalorder %s33, 5
      %p235 = por %p233, %p234
      %p236 = scmp.ne.s32.totalorder %s225, %s226
      %p237 = scmp.eq.s32.totalorder %s33, 0
      %p238 = por %p236, %p237
      %p239 = scmp.ne.s32.totalorder %s225, %s226
      %p240 = scmp.eq.s32.totalorder %s34, 5
      %p241 = por %p239, %p240
      %p243 = scmp.ne.s32.totalorder %s226, %s242
      %p244 = scmp.eq.s32.totalorder %s34, 0
      %p245 = por %p243, %p244
      %s246 = ssub.s32 %s36, %s43
      %p247 = scmp.eq.s32.totalorder %s246, 0
      %s249 = sadd.s32 %s248, 1
      %s250 = scalar_select %p247, %s248, %s249
      %p253 = pneg %p247
      %p254 = scmp.eq.s32.totalorder %s28, 5
      %p255 = por %p253, %p254
      %p256 = scmp.ne.s32.totalorder %s248, %s251
      %p257 = scmp.eq.s32.totalorder %s28, 0
      %p258 = por %p256, %p257
      %p259 = scmp.ne.s32.totalorder %s248, %s251
      %p260 = scmp.eq.s32.totalorder %s33, 5
      %p261 = por %p259, %p260
      %p262 = scmp.ne.s32.totalorder %s251, %s252
      %p263 = scmp.eq.s32.totalorder %s33, 0
      %p264 = por %p262, %p263
      %p265 = scmp.ne.s32.totalorder %s251, %s252
      %p266 = scmp.eq.s32.totalorder %s34, 5
      %p267 = por %p265, %p266
      %p269 = scmp.ne.s32.totalorder %s252, %s268
      %p270 = scmp.eq.s32.totalorder %s34, 0
      %p271 = por %p269, %p270
      %s272 = ssub.s32 %s36, %s43
      %p273 = scmp.eq.s32.totalorder %s272, 0
      %s275 = sadd.s32 %s274, 1
      %s276 = scalar_select %p273, %s274, %s275
      %p279 = pneg %p273
      %p280 = scmp.eq.s32.totalorder %s28, 5
      %p281 = por %p279, %p280
      %p282 = scmp.ne.s32.totalorder %s274, %s277
      %p283 = scmp.eq.s32.totalorder %s28, 0
      %p284 = por %p282, %p283
      %p285 = scmp.ne.s32.totalorder %s274, %s277
      %p286 = scmp.eq.s32.totalorder %s33, 5
      %p287 = por %p285, %p286
      %p288 = scmp.ne.s32.totalorder %s277, %s278
      %p289 = scmp.eq.s32.totalorder %s33, 0
      %p290 = por %p288, %p289
      %p291 = scmp.ne.s32.totalorder %s277, %s278
      %p292 = scmp.eq.s32.totalorder %s34, 5
      %p293 = por %p291, %p292
      %p295 = scmp.ne.s32.totalorder %s278, %s294
      %p296 = scmp.eq.s32.totalorder %s34, 0
      %p297 = por %p295, %p296
      %s298 = ssub.s32 %s36, %s43
      %p299 = scmp.eq.s32.totalorder %s298, 0
      %s301 = sadd.s32 %s300, 1
      %s302 = scalar_select %p299, %s300, %s301
      %p305 = pneg %p299
      %p306 = scmp.eq.s32.totalorder %s28, 5
      %p307 = por %p305, %p306
      %p308 = scmp.ne.s32.totalorder %s300, %s303
      %p309 = scmp.eq.s32.totalorder %s28, 0
      %p310 = por %p308, %p309
      %p311 = scmp.ne.s32.totalorder %s300, %s303
      %p312 = scmp.eq.s32.totalorder %s33, 5
      %p313 = por %p311, %p312
      %p314 = scmp.ne.s32.totalorder %s303, %s304
      %p315 = scmp.eq.s32.totalorder %s33, 0
      %p316 = por %p314, %p315
      %p317 = scmp.ne.s32.totalorder %s303, %s304
      %p318 = scmp.eq.s32.totalorder %s34, 5
      %p319 = por %p317, %p318
      %p321 = scmp.ne.s32.totalorder %s304, %s320
      %p322 = scmp.eq.s32.totalorder %s34, 0
      %p323 = por %p321, %p322
      %s324 = ssub.s32 %s36, %s43
      %p325 = scmp.eq.s32.totalorder %s324, 0
      %s327 = sadd.s32 %s326, 1
      %s328 = scalar_select %p325, %s326, %s327
      %p331 = pneg %p325
      %p332 = scmp.eq.s32.totalorder %s28, 5
      %p333 = por %p331, %p332
      %p334 = scmp.ne.s32.totalorder %s326, %s329
      %p335 = scmp.eq.s32.totalorder %s28, 0
      %p336 = por %p334, %p335
      %p337 = scmp.ne.s32.totalorder %s326, %s329
      %p338 = scmp.eq.s32.totalorder %s33, 5
      %p339 = por %p337, %p338
      %p340 = scmp.ne.s32.totalorder %s329, %s330
      %p341 = scmp.eq.s32.totalorder %s33, 0
      %p342 = por %p340, %p341
      %p343 = scmp.ne.s32.totalorder %s329, %s330
      %p344 = scmp.eq.s32.totalorder %s34, 5
      %p345 = por %p343, %p344
      %p347 = scmp.ne.s32.totalorder %s330, %s346
      %p348 = scmp.eq.s32.totalorder %s34, 0
      %p349 = por %p347, %p348
      %s350 = ssub.s32 %s36, %s43
      %p351 = scmp.eq.s32.totalorder %s350, 0
      %s353 = sadd.s32 %s352, 1
      %s354 = scalar_select %p351, %s352, %s353
      %p357 = pneg %p351
      %p358 = scmp.eq.s32.totalorder %s28, 5
      %p359 = por %p357, %p358
      %p360 = scmp.ne.s32.totalorder %s352, %s355
      %p361 = scmp.eq.s32.totalorder %s28, 0
      %p362 = por %p360, %p361
      %p363 = scmp.ne.s32.totalorder %s352, %s355
      %p364 = scmp.eq.s32.totalorder %s33, 5
      %p365 = por %p363, %p364
      %p366 = scmp.ne.s32.totalorder %s355, %s356
      %p367 = scmp.eq.s32.totalorder %s33, 0
      %p368 = por %p366, %p367
      %p369 = scmp.ne.s32.totalorder %s355, %s356
      %p370 = scmp.eq.s32.totalorder %s34, 5
      %p371 = por %p369, %p370
      %p373 = scmp.ne.s32.totalorder %s356, %s372
      %p374 = scmp.eq.s32.totalorder %s34, 0
      %p375 = por %p373, %p374
      %s376 = ssub.s32 %s36, %s43
      %p377 = scmp.eq.s32.totalorder %s376, 0
      %s379 = sadd.s32 %s378, 1
      %s380 = scalar_select %p377, %s378, %s379
      %p383 = pneg %p377
      %p384 = scmp.eq.s32.totalorder %s28, 5
      %p385 = por %p383, %p384
      %p386 = scmp.ne.s32.totalorder %s378, %s381
      %p387 = scmp.eq.s32.totalorder %s28, 0
      %p388 = por %p386, %p387
      %p389 = scmp.ne.s32.totalorder %s378, %s381
      %p390 = scmp.eq.s32.totalorder %s33, 5
      %p391 = por %p389, %p390
      %p392 = scmp.ne.s32.totalorder %s381, %s382
      %p393 = scmp.eq.s32.totalorder %s33, 0
      %p394 = por %p392, %p393
      %p395 = scmp.ne.s32.totalorder %s381, %s382
      %p396 = scmp.eq.s32.totalorder %s34, 5
      %p397 = por %p395, %p396
      %p399 = scmp.ne.s32.totalorder %s382, %s398
      %p400 = scmp.eq.s32.totalorder %s34, 0
      %p401 = por %p399, %p400
      %s402 = ssub.s32 %s36, %s43
      %p403 = scmp.eq.s32.totalorder %s402, 0
      %s405 = sadd.s32 %s404, 1
      %s406 = scalar_select %p403, %s404, %s405
      %p409 = pneg %p403
      %p410 = scmp.eq.s32.totalorder %s28, 5
      %p411 = por %p409, %p410
      %p412 = scmp.ne.s32.totalorder %s404, %s407
      %p413 = scmp.eq.s32.totalorder %s28, 0
      %p414 = por %p412, %p413
      %p415 = scmp.ne.s32.totalorder %s404, %s407
      %p416 = scmp.eq.s32.totalorder %s33, 5
      %p417 = por %p415, %p416
      %p418 = scmp.ne.s32.totalorder %s407, %s408
      %p419 = scmp.eq.s32.totalorder %s33, 0
      %p420 = por %p418, %p419
      %p421 = scmp.ne.s32.totalorder %s407, %s408
      %p422 = scmp.eq.s32.totalorder %s34, 5
      %p423 = por %p421, %p422
      %p425 = scmp.ne.s32.totalorder %s408, %s424
      %p426 = scmp.eq.s32.totalorder %s34, 0
      %p427 = por %p425, %p426
      %s428 = ssub.s32 %s36, %s43
      %p429 = scmp.eq.s32.totalorder %s428, 0
      %s431 = sadd.s32 %s430, 1
      %s432 = scalar_select %p429, %s430, %s431
      %p435 = pneg %p429
      %p436 = scmp.eq.s32.totalorder %s28, 5
      %p437 = por %p435, %p436
      %p438 = scmp.ne.s32.totalorder %s430, %s433
      %p439 = scmp.eq.s32.totalorder %s28, 0
      %p440 = por %p438, %p439
      %p441 = scmp.ne.s32.totalorder %s430, %s433
      %p442 = scmp.eq.s32.totalorder %s33, 5
      %p443 = por %p441, %p442
      %p444 = scmp.ne.s32.totalorder %s433, %s434
      %p445 = scmp.eq.s32.totalorder %s33, 0
      %p446 = por %p444, %p445
      %p447 = scmp.ne.s32.totalorder %s433, %s434
      %p448 = scmp.eq.s32.totalorder %s34, 5
      %p449 = por %p447, %p448
      %p451 = scmp.ne.s32.totalorder %s434, %s450
      %p452 = scmp.eq.s32.totalorder %s34, 0
      %p453 = por %p451, %p452
      %s454 = ssub.s32 %s36, %s43
      %p455 = scmp.eq.s32.totalorder %s454, 0
      %s457 = sadd.s32 %s456, 1
      %s458 = scalar_select %p455, %s456, %s457
      %p461 = pneg %p455
      %p462 = scmp.eq.s32.totalorder %s28, 5
      %p463 = por %p461, %p462
      %p464 = scmp.ne.s32.totalorder %s456, %s459
      %p465 = scmp.eq.s32.totalorder %s28, 0
      %p466 = por %p464, %p465
      %p467 = scmp.ne.s32.totalorder %s456, %s459
      %p468 = scmp.eq.s32.totalorder %s33, 5
      %p469 = por %p467, %p468
      %p470 = scmp.ne.s32.totalorder %s459, %s460
      %p471 = scmp.eq.s32.totalorder %s33, 0
      %p472 = por %p470, %p471
      %p473 = scmp.ne.s32.totalorder %s459, %s460
      %p474 = scmp.eq.s32.totalorder %s34, 5
      %p475 = por %p473, %p474
      %p477 = scmp.ne.s32.totalorder %s460, %s476
      %p478 = scmp.eq.s32.totalorder %s34, 0
      %p479 = por %p477, %p478
      %s480 = ssub.s32 %s36, %s43
      %p481 = scmp.eq.s32.totalorder %s480, 0
      %s483 = sadd.s32 %s482, 1
      %s484 = scalar_select %p481, %s482, %s483
      %p487 = pneg %p481
      %p488 = scmp.eq.s32.totalorder %s28, 5
      %p489 = por %p487, %p488
      %p490 = scmp.ne.s32.totalorder %s482, %s485
      %p491 = scmp.eq.s32.totalorder %s28, 0
      %p492 = por %p490, %p491
      %p493 = scmp.ne.s32.totalorder %s482, %s485
      %p494 = scmp.eq.s32.totalorder %s33, 5
      %p495 = por %p493, %p494
      %p496 = scmp.ne.s32.totalorder %s485, %s486
      %p497 = scmp.eq.s32.totalorder %s33, 0
      %p498 = por %p496, %p497
      %p499 = scmp.ne.s32.totalorder %s485, %s486
      %p500 = scmp.eq.s32.totalorder %s34, 5
      %p501 = por %p499, %p500
      %p503 = scmp.ne.s32.totalorder %s486, %s502
      %p504 = scmp.eq.s32.totalorder %s34, 0
      %p505 = por %p503, %p504
      %s506 = ssub.s32 %s36, %s43
      %p507 = scmp.eq.s32.totalorder %s506, 0
      %s509 = sadd.s32 %s508, 1
      %s510 = scalar_select %p507, %s508, %s509
      %p513 = pneg %p507
      %p514 = scmp.eq.s32.totalorder %s28, 5
      %p515 = por %p513, %p514
      %p516 = scmp.ne.s32.totalorder %s508, %s511
      %p517 = scmp.eq.s32.totalorder %s28, 0
      %p518 = por %p516, %p517
      %p519 = scmp.ne.s32.totalorder %s508, %s511
      %p520 = scmp.eq.s32.totalorder %s33, 5
      %p521 = por %p519, %p520
      %p522 = scmp.ne.s32.totalorder %s511, %s512
      %p523 = scmp.eq.s32.totalorder %s33, 0
      %p524 = por %p522, %p523
      %p525 = scmp.ne.s32.totalorder %s511, %s512
      %p526 = scmp.eq.s32.totalorder %s34, 5
      %p527 = por %p525, %p526
      %p529 = scmp.ne.s32.totalorder %s512, %s528
      %p530 = scmp.eq.s32.totalorder %s34, 0
      %p531 = por %p529, %p530
      %s532 = ssub.s32 %s35, %s47
      %p533 = scmp.eq.s32.totalorder %s532, 0
      %s535 = sadd.s32 %s534, 1
      %s536 = scalar_select %p533, %s534, %s535
      %p539 = pneg %p533
      %p540 = scmp.eq.s32.totalorder %s28, 5
      %p541 = por %p539, %p540
      %p542 = scmp.ne.s32.totalorder %s534, %s537
      %p543 = scmp.eq.s32.totalorder %s28, 0
      %p544 = por %p542, %p543
      %p545 = scmp.ne.s32.totalorder %s534, %s537
      %p546 = scmp.eq.s32.totalorder %s33, 5
      %p547 = por %p545, %p546
      %p548 = scmp.ne.s32.totalorder %s537, %s538
      %p549 = scmp.eq.s32.totalorder %s33, 0
      %p550 = por %p548, %p549
      %p551 = scmp.ne.s32.totalorder %s537, %s538
      %p552 = scmp.eq.s32.totalorder %s34, 5
      %p553 = por %p551, %p552
      %p555 = scmp.ne.s32.totalorder %s538, %s554
      %p556 = scmp.eq.s32.totalorder %s34, 0
      %p557 = por %p555, %p556
      %p558 = scmp.le.s32.totalorder 1, %s28
      %p559 = scmp.lt.s32.totalorder %s28, 7
      %p560 = pnand %p558, %p559
      %p561 = pneg %p560
      // Predicated region
      $region9: #{tpu_custom_call.1} parent=5 // pred_check
        _
      $region10: #{tpu_custom_call.1} parent=5 // pred_check_branch
        %563 = sbr.rel (%p560) target = $region12
      $region11: #{tpu_custom_call.1} parent=5 // pred_region
        %s564 = ssub.s32 %s28, 1
        // Predicated region
        $region13: #{tpu_custom_call.1} parent=11 // pred_check
          %p565 = pneg %p87
        $region14: #{tpu_custom_call.1} parent=11 // pred_check_branch
          %567 = sbr.rel (%p565) target = $region16
        $region15: #{tpu_custom_call.1} parent=11 // pred_region
          _
        $region16: #{tpu_custom_call.1} parent=11 // pred_fallthru
          _
        // Predicated region
        $region17: #{tpu_custom_call.1} parent=11 // pred_check
          %p568 = pneg %p108
        $region18: #{tpu_custom_call.1} parent=11 // pred_check_branch
          %570 = sbr.rel (%p568) target = $region20
        $region19: #{tpu_custom_call.1} parent=11 // pred_region
          _
        $region20: #{tpu_custom_call.1} parent=11 // pred_fallthru
          _
      $region12: #{tpu_custom_call.1} parent=5 // pred_fallthru
        _
      %p571 = scmp.lt.s32.totalorder %s28, 6
      // Predicated region
      $region21: #{tpu_custom_call.1} parent=5 // pred_check
        %p572 = pneg %p571
      $region22: #{tpu_custom_call.1} parent=5 // pred_check_branch
        %574 = sbr.rel (%p572) target = $region24
      $region23: #{tpu_custom_call.1} parent=5 // pred_region
        // Predicated region
        $region25: #{tpu_custom_call.1} parent=23 // pred_check
          %p575 = pneg %p60
        $region26: #{tpu_custom_call.1} parent=23 // pred_check_branch
          %577 = sbr.rel (%p575) target = $region28
        $region27: #{tpu_custom_call.1} parent=23 // pred_region
          %p578 = scmp.lt.s32.totalorder %s35, 1
          %s579 = scalar_select %p578, %s35, 1
          %s580 = smul.addr %s579, 8
          %s581 = scalar_lea.vmem %s0, %s580
        $region28: #{tpu_custom_call.1} parent=23 // pred_fallthru
          _
        // Predicated region
        $region29: #{tpu_custom_call.1} parent=23 // pred_check
          %p582 = pneg %p128
        $region30: #{tpu_custom_call.1} parent=23 // pred_check_branch
          %584 = sbr.rel (%p582) target = $region32
        $region31: #{tpu_custom_call.1} parent=23 // pred_region
          %p585 = scmp.lt.s32.totalorder %s36, 2
          %s586 = scalar_select %p585, %s36, 2
          %s587 = smul.addr %s586, 32
          %s588 = smul.addr %s587, 4
          %s589 = scalar_lea.vmem %s3, %s588
        $region32: #{tpu_custom_call.1} parent=23 // pred_fallthru
          _
        // Predicated region
        $region33: #{tpu_custom_call.1} parent=23 // pred_check
          %p590 = pneg %p154
        $region34: #{tpu_custom_call.1} parent=23 // pred_check_branch
          %592 = sbr.rel (%p590) target = $region36
        $region35: #{tpu_custom_call.1} parent=23 // pred_region
          %p593 = scmp.lt.s32.totalorder %s36, 2
          %s594 = scalar_select %p593, %s36, 2
          %s595 = smul.addr %s594, 2
          %s596 = scalar_lea.vmem %s4, %s595
        $region36: #{tpu_custom_call.1} parent=23 // pred_fallthru
          _
        // Predicated region
        $region37: #{tpu_custom_call.1} parent=23 // pred_check
          %p597 = pneg %p180
        $region38: #{tpu_custom_call.1} parent=23 // pred_check_branch
          %599 = sbr.rel (%p597) target = $region40
        $region39: #{tpu_custom_call.1} parent=23 // pred_region
          %p600 = scmp.lt.s32.totalorder %s36, 2
          %s601 = scalar_select %p600, %s36, 2
          %s602 = smul.addr %s601, 32
          %s603 = smul.addr %s602, 4
          %s604 = scalar_lea.vmem %s5, %s603
        $region40: #{tpu_custom_call.1} parent=23 // pred_fallthru
          _
        // Predicated region
        $region41: #{tpu_custom_call.1} parent=23 // pred_check
          %p605 = pneg %p206
        $region42: #{tpu_custom_call.1} parent=23 // pred_check_branch
          %607 = sbr.rel (%p605) target = $region44
        $region43: #{tpu_custom_call.1} parent=23 // pred_region
          %p608 = scmp.lt.s32.totalorder %s36, 2
          %s609 = scalar_select %p608, %s36, 2
          %s610 = smul.addr %s609, 2
          %s611 = scalar_lea.vmem %s6, %s610
        $region44: #{tpu_custom_call.1} parent=23 // pred_fallthru
          _
        // Predicated region
        $region45: #{tpu_custom_call.1} parent=23 // pred_check
          %p612 = pneg %p232
        $region46: #{tpu_custom_call.1} parent=23 // pred_check_branch
          %614 = sbr.rel (%p612) target = $region48
        $region47: #{tpu_custom_call.1} parent=23 // pred_region
          %p615 = scmp.lt.s32.totalorder %s36, 2
          %s616 = scalar_select %p615, %s36, 2
          %s617 = smul.addr %s616, 32
          %s618 = smul.addr %s617, 4
          %s619 = scalar_lea.vmem %s7, %s618
        $region48: #{tpu_custom_call.1} parent=23 // pred_fallthru
          _
        // Predicated region
        $region49: #{tpu_custom_call.1} parent=23 // pred_check
          %p620 = pneg %p258
        $region50: #{tpu_custom_call.1} parent=23 // pred_check_branch
          %622 = sbr.rel (%p620) target = $region52
        $region51: #{tpu_custom_call.1} parent=23 // pred_region
          %p623 = scmp.lt.s32.totalorder %s36, 2
          %s624 = scalar_select %p623, %s36, 2
          %s625 = smul.addr %s624, 2
          %s626 = scalar_lea.vmem %s8, %s625
        $region52: #{tpu_custom_call.1} parent=23 // pred_fallthru
          _
        // Predicated region
        $region53: #{tpu_custom_call.1} parent=23 // pred_check
          %p627 = pneg %p284
        $region54: #{tpu_custom_call.1} parent=23 // pred_check_branch
          %629 = sbr.rel (%p627) target = $region56
        $region55: #{tpu_custom_call.1} parent=23 // pred_region
          %p630 = scmp.lt.s32.totalorder %s36, 2
          %s631 = scalar_select %p630, %s36, 2
          %s632 = smul.addr %s631, 16
          %s633 = smul.addr %s632, 4
          %s634 = scalar_lea.vmem %s9, %s633
        $region56: #{tpu_custom_call.1} parent=23 // pred_fallthru
          _
        // Predicated region
        $region57: #{tpu_custom_call.1} parent=23 // pred_check
          %p635 = pneg %p310
        $region58: #{tpu_custom_call.1} parent=23 // pred_check_branch
          %637 = sbr.rel (%p635) target = $region60
        $region59: #{tpu_custom_call.1} parent=23 // pred_region
          %p638 = scmp.lt.s32.totalorder %s36, 2
          %s639 = scalar_select %p638, %s36, 2
          %s640 = scalar_lea.vmem %s10, %s639
        $region60: #{tpu_custom_call.1} parent=23 // pred_fallthru
          _
        // Predicated region
        $region61: #{tpu_custom_call.1} parent=23 // pred_check
          %p641 = pneg %p336
        $region62: #{tpu_custom_call.1} parent=23 // pred_check_branch
          %643 = sbr.rel (%p641) target = $region64
        $region63: #{tpu_custom_call.1} parent=23 // pred_region
          %p644 = scmp.lt.s32.totalorder %s36, 2
          %s645 = scalar_select %p644, %s36, 2
          %s646 = scalar_lea.vmem %s11, %s645
        $region64: #{tpu_custom_call.1} parent=23 // pred_fallthru
          _
        // Predicated region
        $region65: #{tpu_custom_call.1} parent=23 // pred_check
          %p647 = pneg %p362
        $region66: #{tpu_custom_call.1} parent=23 // pred_check_branch
          %649 = sbr.rel (%p647) target = $region68
        $region67: #{tpu_custom_call.1} parent=23 // pred_region
          %p650 = scmp.lt.s32.totalorder %s36, 2
          %s651 = scalar_select %p650, %s36, 2
          %s652 = scalar_lea.vmem %s12, %s651
        $region68: #{tpu_custom_call.1} parent=23 // pred_fallthru
          _
        // Predicated region
        $region69: #{tpu_custom_call.1} parent=23 // pred_check
          %p653 = pneg %p388
        $region70: #{tpu_custom_call.1} parent=23 // pred_check_branch
          %655 = sbr.rel (%p653) target = $region72
        $region71: #{tpu_custom_call.1} parent=23 // pred_region
          %p656 = scmp.lt.s32.totalorder %s36, 2
          %s657 = scalar_select %p656, %s36, 2
          %s658 = smul.addr %s657, 32
          %s659 = smul.addr %s658, 4
          %s660 = scalar_lea.vmem %s13, %s659
        $region72: #{tpu_custom_call.1} parent=23 // pred_fallthru
          _
        // Predicated region
        $region73: #{tpu_custom_call.1} parent=23 // pred_check
          %p661 = pneg %p414
        $region74: #{tpu_custom_call.1} parent=23 // pred_check_branch
          %663 = sbr.rel (%p661) target = $region76
        $region75: #{tpu_custom_call.1} parent=23 // pred_region
          %p664 = scmp.lt.s32.totalorder %s36, 2
          %s665 = scalar_select %p664, %s36, 2
          %s666 = smul.addr %s665, 2
          %s667 = scalar_lea.vmem %s14, %s666
        $region76: #{tpu_custom_call.1} parent=23 // pred_fallthru
          _
        // Predicated region
        $region77: #{tpu_custom_call.1} parent=23 // pred_check
          %p668 = pneg %p440
        $region78: #{tpu_custom_call.1} parent=23 // pred_check_branch
          %670 = sbr.rel (%p668) target = $region80
        $region79: #{tpu_custom_call.1} parent=23 // pred_region
          %p671 = scmp.lt.s32.totalorder %s36, 2
          %s672 = scalar_select %p671, %s36, 2
          %s673 = smul.addr %s672, 32
          %s674 = smul.addr %s673, 4
          %s675 = scalar_lea.vmem %s15, %s674
        $region80: #{tpu_custom_call.1} parent=23 // pred_fallthru
          _
        // Predicated region
        $region81: #{tpu_custom_call.1} parent=23 // pred_check
          %p676 = pneg %p466
        $region82: #{tpu_custom_call.1} parent=23 // pred_check_branch
          %678 = sbr.rel (%p676) target = $region84
        $region83: #{tpu_custom_call.1} parent=23 // pred_region
          %p679 = scmp.lt.s32.totalorder %s36, 2
          %s680 = scalar_select %p679, %s36, 2
          %s681 = scalar_lea.vmem %s16, %s680
        $region84: #{tpu_custom_call.1} parent=23 // pred_fallthru
          _
        // Predicated region
        $region85: #{tpu_custom_call.1} parent=23 // pred_check
          %p682 = pneg %p492
        $region86: #{tpu_custom_call.1} parent=23 // pred_check_branch
          %684 = sbr.rel (%p682) target = $region88
        $region87: #{tpu_custom_call.1} parent=23 // pred_region
          %p685 = scmp.lt.s32.totalorder %s36, 2
          %s686 = scalar_select %p685, %s36, 2
          %s687 = scalar_lea.vmem %s17, %s686
        $region88: #{tpu_custom_call.1} parent=23 // pred_fallthru
          _
        // Predicated region
        $region89: #{tpu_custom_call.1} parent=23 // pred_check
          %p688 = pneg %p518
        $region90: #{tpu_custom_call.1} parent=23 // pred_check_branch
          %690 = sbr.rel (%p688) target = $region92
        $region91: #{tpu_custom_call.1} parent=23 // pred_region
          %p691 = scmp.lt.s32.totalorder %s36, 2
          %s692 = scalar_select %p691, %s36, 2
          %s693 = scalar_lea.vmem %s18, %s692
        $region92: #{tpu_custom_call.1} parent=23 // pred_fallthru
          _
      $region24: #{tpu_custom_call.1} parent=5 // pred_fallthru
        _
      %p694 = scmp.le.s32.totalorder 1, %s28
      %p695 = scmp.lt.s32.totalorder %s28, 7
      %p696 = pnand %p694, %p695
      %p697 = pneg %p696
      // Predicated region
      $region93: #{tpu_custom_call.1} parent=5 // pred_check
        _
      $region94: #{tpu_custom_call.1} parent=5 // pred_check_branch
        %699 = sbr.rel (%p696) target = $region96
      $region95: #{tpu_custom_call.1} parent=5 // pred_region
        %s700 = ssub.s32 %s28, 1
        %p701 = scmp.lt.s32.totalorder %s37, 1
        %s702 = scalar_select %p701, %s37, 1
        %s703 = smul.addr %s702, 8
        %s704 = scalar_lea.vmem %s0, %s703
        %p705 = pneg %p66
        %p706 = pneg %p63
        %p707 = pneg %p87
        %p708 = pneg %p84
        %p709 = pneg %p108
        %p710 = pneg %p105
        %p711 = scmp.lt.s32.totalorder %s38, 2
        %s712 = scalar_select %p711, %s38, 2
        %s713 = smul.addr %s712, 32
        %s714 = smul.addr %s713, 4
        %s715 = scalar_lea.vmem %s3, %s714
        %p716 = pneg %p134
        %p717 = pneg %p131
        %p718 = scmp.lt.s32.totalorder %s38, 2
        %s719 = scalar_select %p718, %s38, 2
        %s720 = smul.addr %s719, 2
        %s721 = scalar_lea.vmem %s4, %s720
        %p722 = pneg %p160
        %p723 = pneg %p157
        %p724 = scmp.lt.s32.totalorder %s38, 2
        %s725 = scalar_select %p724, %s38, 2
        %s726 = smul.addr %s725, 32
        %s727 = smul.addr %s726, 4
        %s728 = scalar_lea.vmem %s5, %s727
        %p729 = pneg %p186
        %p730 = pneg %p183
        %p731 = scmp.lt.s32.totalorder %s38, 2
        %s732 = scalar_select %p731, %s38, 2
        %s733 = smul.addr %s732, 2
        %s734 = scalar_lea.vmem %s6, %s733
        %p735 = pneg %p212
        %p736 = pneg %p209
        %p737 = scmp.lt.s32.totalorder %s38, 2
        %s738 = scalar_select %p737, %s38, 2
        %s739 = smul.addr %s738, 32
        %s740 = smul.addr %s739, 4
        %s741 = scalar_lea.vmem %s7, %s740
        %p742 = pneg %p238
        %p743 = pneg %p235
        %p744 = scmp.lt.s32.totalorder %s38, 2
        %s745 = scalar_select %p744, %s38, 2
        %s746 = smul.addr %s745, 2
        %s747 = scalar_lea.vmem %s8, %s746
        %p748 = pneg %p264
        %p749 = pneg %p261
        %p750 = scmp.lt.s32.totalorder %s38, 2
        %s751 = scalar_select %p750, %s38, 2
        %s752 = smul.addr %s751, 16
        %s753 = smul.addr %s752, 4
        %s754 = scalar_lea.vmem %s9, %s753
        %p755 = pneg %p290
        %p756 = pneg %p287
        %p757 = scmp.lt.s32.totalorder %s38, 2
        %s758 = scalar_select %p757, %s38, 2
        %s759 = scalar_lea.vmem %s10, %s758
        %p760 = pneg %p316
        %p761 = pneg %p313
        %p762 = scmp.lt.s32.totalorder %s38, 2
        %s763 = scalar_select %p762, %s38, 2
        %s764 = scalar_lea.vmem %s11, %s763
        %p765 = pneg %p342
        %p766 = pneg %p339
        %p767 = scmp.lt.s32.totalorder %s38, 2
        %s768 = scalar_select %p767, %s38, 2
        %s769 = scalar_lea.vmem %s12, %s768
        %p770 = pneg %p368
        %p771 = pneg %p365
        %p772 = scmp.lt.s32.totalorder %s38, 2
        %s773 = scalar_select %p772, %s38, 2
        %s774 = smul.addr %s773, 32
        %s775 = smul.addr %s774, 4
        %s776 = scalar_lea.vmem %s13, %s775
        %p777 = pneg %p394
        %p778 = pneg %p391
        %p779 = scmp.lt.s32.totalorder %s38, 2
        %s780 = scalar_select %p779, %s38, 2
        %s781 = smul.addr %s780, 2
        %s782 = scalar_lea.vmem %s14, %s781
        %p783 = pneg %p420
        %p784 = pneg %p417
        %p785 = scmp.lt.s32.totalorder %s38, 2
        %s786 = scalar_select %p785, %s38, 2
        %s787 = smul.addr %s786, 32
        %s788 = smul.addr %s787, 4
        %s789 = scalar_lea.vmem %s15, %s788
        %p790 = pneg %p446
        %p791 = pneg %p443
        %p792 = scmp.lt.s32.totalorder %s38, 2
        %s793 = scalar_select %p792, %s38, 2
        %s794 = scalar_lea.vmem %s16, %s793
        %p795 = pneg %p472
        %p796 = pneg %p469
        %p797 = scmp.lt.s32.totalorder %s38, 2
        %s798 = scalar_select %p797, %s38, 2
        %s799 = scalar_lea.vmem %s17, %s798
        %p800 = pneg %p498
        %p801 = pneg %p495
        %p802 = scmp.lt.s32.totalorder %s38, 2
        %s803 = scalar_select %p802, %s38, 2
        %s804 = scalar_lea.vmem %s18, %s803
        %p805 = pneg %p524
        %p806 = pneg %p521
        %p807 = pneg %p550
        %p808 = pneg %p547
        %s809 = sand.u32 %s537, 1
        %s810 = scalar_lea.sflag [#allocation4], %s809
        %s811 = sand.u32 %s537, 1
        %s812 = smul.addr %s811, 8
        %s813 = scalar_lea.vmem [#allocation3], %s812
        %p814 = scmp.lt.s32.totalorder %s37, 1
        %s815 = scalar_select %p814, %s37, 1
        %s816 = smul.addr %s815, 8
        %s817 = scalar_lea.vmem %s0, %s816
        %p818 = scmp.lt.s32.totalorder %s38, 2
        %s819 = scalar_select %p818, %s38, 2
        %s820 = smul.addr %s819, 32
        %s821 = smul.addr %s820, 4
        %s822 = scalar_lea.vmem %s3, %s821
        %p823 = scmp.lt.s32.totalorder %s38, 2
        %s824 = scalar_select %p823, %s38, 2
        %s825 = smul.addr %s824, 2
        %s826 = scalar_lea.vmem %s4, %s825
        %p827 = scmp.lt.s32.totalorder %s38, 2
        %s828 = scalar_select %p827, %s38, 2
        %s829 = smul.addr %s828, 32
        %s830 = smul.addr %s829, 4
        %s831 = scalar_lea.vmem %s5, %s830
        %p832 = scmp.lt.s32.totalorder %s38, 2
        %s833 = scalar_select %p832, %s38, 2
        %s834 = smul.addr %s833, 2
        %s835 = scalar_lea.vmem %s6, %s834
        %p836 = scmp.lt.s32.totalorder %s38, 2
        %s837 = scalar_select %p836, %s38, 2
        %s838 = smul.addr %s837, 32
        %s839 = smul.addr %s838, 4
        %s840 = scalar_lea.vmem %s7, %s839
        %p841 = scmp.lt.s32.totalorder %s38, 2
        %s842 = scalar_select %p841, %s38, 2
        %s843 = smul.addr %s842, 2
        %s844 = scalar_lea.vmem %s8, %s843
        %p845 = scmp.lt.s32.totalorder %s38, 2
        %s846 = scalar_select %p845, %s38, 2
        %s847 = smul.addr %s846, 16
        %s848 = smul.addr %s847, 4
        %s849 = scalar_lea.vmem %s9, %s848
        %p850 = scmp.lt.s32.totalorder %s38, 2
        %s851 = scalar_select %p850, %s38, 2
        %s852 = scalar_lea.vmem %s10, %s851
        %p853 = scmp.lt.s32.totalorder %s38, 2
        %s854 = scalar_select %p853, %s38, 2
        %s855 = scalar_lea.vmem %s11, %s854
        %p856 = scmp.lt.s32.totalorder %s38, 2
        %s857 = scalar_select %p856, %s38, 2
        %s858 = scalar_lea.vmem %s12, %s857
        %p859 = scmp.lt.s32.totalorder %s38, 2
        %s860 = scalar_select %p859, %s38, 2
        %s861 = smul.addr %s860, 32
        %s862 = smul.addr %s861, 4
        %s863 = scalar_lea.vmem %s13, %s862
        %p864 = scmp.lt.s32.totalorder %s38, 2
        %s865 = scalar_select %p864, %s38, 2
        %s866 = smul.addr %s865, 2
        %s867 = scalar_lea.vmem %s14, %s866
        %p868 = scmp.lt.s32.totalorder %s38, 2
        %s869 = scalar_select %p868, %s38, 2
        %s870 = smul.addr %s869, 32
        %s871 = smul.addr %s870, 4
        %s872 = scalar_lea.vmem %s15, %s871
        %p873 = scmp.lt.s32.totalorder %s38, 2
        %s874 = scalar_select %p873, %s38, 2
        %s875 = scalar_lea.vmem %s16, %s874
        %p876 = scmp.lt.s32.totalorder %s38, 2
        %s877 = scalar_select %p876, %s38, 2
        %s878 = scalar_lea.vmem %s17, %s877
        %p879 = scmp.lt.s32.totalorder %s38, 2
        %s880 = scalar_select %p879, %s38, 2
        %s881 = scalar_lea.vmem %s18, %s880
        %p883 = scmp.eq.s32.totalorder %s38, 0
        // Predicated region
        $region97: #{tpu_custom_call.1} parent=95 // pred_check
          %p884 = pneg %p883
        $region98: #{tpu_custom_call.1} parent=95 // pred_check_branch
          %886 = sbr.rel (%p884) target = $region100
        $region99: #{tpu_custom_call.1} parent=95 // pred_region
          %v887 = vld [vmem:[%s817] sm:$0xff]
          %v888 = vpack.c.bf16 %v887, %v887
          %v889 = vld [vmem:[%s1] sm:$0xf]
          %v890 = vld [vmem:[%s1 + $0x4] sm:$0xf]
          %v891 = vld [vmem:[%s2] sm:$0xff]
          %v894 = vunpack.c.l.b16 %v889
          %v895 = vunpack.c.l.b16 %v890
          %v896 = vpack.c.b16 %v895, %v894
          %vm898 = vcmask 130048
          %v900 = vsel %vm898, %v888, 0
          %902 = vmatprep.subr.bf16.mxu0 0
          %903 = vmatpush1.bf16.msra.mxu0 %v896
          %904 = vmatprep.subr.bf16.mxu0 0
          %905 = vmatpush1.bf16.msra.mxu0 0
          %906 = vmatprep.subr.bf16.mxu0 0
          %907 = vmatpush1.bf16.msra.mxu0 0
          %908 = vmatprep.subr.bf16.mxu0 0
          %909 = vmatpush1.bf16.msra.mxu0 0
          %910 = vmatprep.subr.bf16.mxu0 0
          %911 = vmatpush1.bf16.msra.mxu0 0
          %912 = vmatprep.subr.bf16.mxu0 0
          %913 = vmatpush1.bf16.msra.mxu0 0
          %914 = vmatprep.subr.bf16.mxu0 0
          %915 = vmatpush1.bf16.msra.mxu0 0
          %916 = vmatprep.subr.bf16.mxu0 0
          %917 = vmatpush1.bf16.msra.mxu0 0
          %918 = vmatprep.subr.bf16.mxu0 0
          %919 = vmatpush1.bf16.msra.mxu0 0
          %920 = vmatprep.subr.bf16.mxu0 0
          %921 = vmatpush1.bf16.msra.mxu0 0
          %922 = vmatprep.subr.bf16.mxu0 0
          %923 = vmatpush1.bf16.msra.mxu0 0
          %924 = vmatprep.subr.bf16.mxu0 0
          %925 = vmatpush1.bf16.msra.mxu0 0
          %926 = vmatprep.subr.bf16.mxu0 0
          %927 = vmatpush1.bf16.msra.mxu0 0
          %928 = vmatprep.subr.bf16.mxu0 0
          %929 = vmatpush1.bf16.msra.mxu0 0
          %930 = vmatprep.subr.bf16.mxu0 0
          %931 = vmatpush1.bf16.msra.mxu0 0
          %932 = vmatprep.subr.bf16.mxu0 0
          %933 = vmatpush1.bf16.msra.mxu0 0
          %934 = vmatprep.mubr.bf16.mxu0 0
          %935 = vmatmul.mubr.bf16.gmra.mrb[0].mxu0 %v900
          %v936 = vpop.f32.mrb[0].mxu0
          %v937 = vadd.f32 %v891, %v936
          %v938 = vpop.f32.mrb[0].mxu0
          %v939 = vpop.f32.mrb[0].mxu0
          %v940 = vpop.f32.mrb[0].mxu0
          %941 = vdwg.mxu0
          %942 = vst [vmem:[#allocation2] sm:$0xff] %v937
        $region100: #{tpu_custom_call.1} parent=95 // pred_fallthru
          _
        %v943 = vld [vmem:[#allocation2] sm:$0xff]
        %v944 = vpack.c.bf16 %v943, %v943
        %v945 = vld [vmem:[%s822] sm:$0xf]
        %v946 = vld [vmem:[%s822 + $0x4] sm:$0xf]
        %v947 = vld [vmem:[%s822 + $0x8] sm:$0xf]
        %v948 = vld [vmem:[%s822 + $0xc] sm:$0xf]
        %v949 = vld [vmem:[%s822 + $0x10] sm:$0xf]
        %v950 = vld [vmem:[%s822 + $0x14] sm:$0xf]
        %v951 = vld [vmem:[%s822 + $0x18] sm:$0xf]
        %v952 = vld [vmem:[%s822 + $0x1c] sm:$0xf]
        %v953 = vld [vmem:[%s822 + $0x20] sm:$0xf]
        %v954 = vld [vmem:[%s822 + $0x24] sm:$0xf]
        %v955 = vld [vmem:[%s822 + $0x28] sm:$0xf]
        %v956 = vld [vmem:[%s822 + $0x2c] sm:$0xf]
        %v957 = vld [vmem:[%s822 + $0x30] sm:$0xf]
        %v958 = vld [vmem:[%s822 + $0x34] sm:$0xf]
        %v959 = vld [vmem:[%s822 + $0x38] sm:$0xf]
        %v960 = vld [vmem:[%s822 + $0x3c] sm:$0xf]
        %v961 = vld [vmem:[%s826] sm:$0x1]
        %v963 = vlaneseq
        %v964 = vshrl.u32 %v963, 7
        %v965 = vsub.s32 0, %v964
        %v966 = vrot.slane %v961, %v965
        %v984 = vunpack.c.l.b16 %v945
        %v985 = vunpack.c.l.b16 %v946
        %v986 = vunpack.c.l.b16 %v947
        %v987 = vunpack.c.l.b16 %v948
        %v988 = vunpack.c.l.b16 %v949
        %v989 = vunpack.c.l.b16 %v950
        %v990 = vunpack.c.l.b16 %v951
        %v991 = vunpack.c.l.b16 %v952
        %v992 = vunpack.c.l.b16 %v953
        %v993 = vunpack.c.l.b16 %v954
        %v994 = vunpack.c.l.b16 %v955
        %v995 = vunpack.c.l.b16 %v956
        %v996 = vunpack.c.l.b16 %v957
        %v997 = vunpack.c.l.b16 %v958
        %v998 = vunpack.c.l.b16 %v959
        %v999 = vunpack.c.l.b16 %v960
        %v1000 = vpack.c.b16 %v985, %v984
        %v1001 = vpack.c.b16 %v987, %v986
        %v1002 = vpack.c.b16 %v989, %v988
        %v1003 = vpack.c.b16 %v991, %v990
        %v1004 = vpack.c.b16 %v993, %v992
        %v1005 = vpack.c.b16 %v995, %v994
        %v1006 = vpack.c.b16 %v997, %v996
        %v1007 = vpack.c.b16 %v999, %v998
        %1016 = vmatprep.subr.bf16.mxu0 0
        %1017 = vmatpush1.bf16.msra.mxu0 %v1000
        %1018 = vmatprep.subr.bf16.mxu0 0
        %1019 = vmatpush1.bf16.msra.mxu0 %v1001
        %1020 = vmatprep.subr.bf16.mxu0 0
        %1021 = vmatpush1.bf16.msra.mxu0 %v1002
        %1022 = vmatprep.subr.bf16.mxu0 0
        %1023 = vmatpush1.bf16.msra.mxu0 %v1003
        %1024 = vmatprep.subr.bf16.mxu0 0
        %1025 = vmatpush1.bf16.msra.mxu0 %v1004
        %1026 = vmatprep.subr.bf16.mxu0 0
        %1027 = vmatpush1.bf16.msra.mxu0 %v1005
        %1028 = vmatprep.subr.bf16.mxu0 0
        %1029 = vmatpush1.bf16.msra.mxu0 %v1006
        %1030 = vmatprep.subr.bf16.mxu0 0
        %1031 = vmatpush1.bf16.msra.mxu0 %v1007
        %1032 = vmatprep.subr.bf16.mxu0 0
        %1033 = vmatpush1.bf16.msra.mxu0 0
        %1034 = vmatprep.subr.bf16.mxu0 0
        %1035 = vmatpush1.bf16.msra.mxu0 0
        %1036 = vmatprep.subr.bf16.mxu0 0
        %1037 = vmatpush1.bf16.msra.mxu0 0
        %1038 = vmatprep.subr.bf16.mxu0 0
        %1039 = vmatpush1.bf16.msra.mxu0 0
        %1040 = vmatprep.subr.bf16.mxu0 0
        %1041 = vmatpush1.bf16.msra.mxu0 0
        %1042 = vmatprep.subr.bf16.mxu0 0
        %1043 = vmatpush1.bf16.msra.mxu0 0
        %1044 = vmatprep.subr.bf16.mxu0 0
        %1045 = vmatpush1.bf16.msra.mxu0 0
        %1046 = vmatprep.subr.bf16.mxu0 0
        %1047 = vmatpush1.bf16.msra.mxu0 0
        %1048 = vmatprep.mubr.bf16.mxu0 0
        %1049 = vmatmul.mubr.bf16.gmra.mrb[0].mxu0 %v944
        %v1050 = vpop.f32.mrb[0].mxu0
        %v1051 = vadd.f32 %v966, %v1050
        %v1052 = vpop.f32.mrb[0].mxu0
        %v1053 = vpop.f32.mrb[0].mxu0
        %v1054 = vpop.f32.mrb[0].mxu0
        %1055 = vdwg.mxu0
        %v1056 = vld [vmem:[%s831] sm:$0xf]
        %v1057 = vld [vmem:[%s831 + $0x4] sm:$0xf]
        %v1058 = vld [vmem:[%s831 + $0x8] sm:$0xf]
        %v1059 = vld [vmem:[%s831 + $0xc] sm:$0xf]
        %v1060 = vld [vmem:[%s831 + $0x10] sm:$0xf]
        %v1061 = vld [vmem:[%s831 + $0x14] sm:$0xf]
        %v1062 = vld [vmem:[%s831 + $0x18] sm:$0xf]
        %v1063 = vld [vmem:[%s831 + $0x1c] sm:$0xf]
        %v1064 = vld [vmem:[%s831 + $0x20] sm:$0xf]
        %v1065 = vld [vmem:[%s831 + $0x24] sm:$0xf]
        %v1066 = vld [vmem:[%s831 + $0x28] sm:$0xf]
        %v1067 = vld [vmem:[%s831 + $0x2c] sm:$0xf]
        %v1068 = vld [vmem:[%s831 + $0x30] sm:$0xf]
        %v1069 = vld [vmem:[%s831 + $0x34] sm:$0xf]
        %v1070 = vld [vmem:[%s831 + $0x38] sm:$0xf]
        %v1071 = vld [vmem:[%s831 + $0x3c] sm:$0xf]
        %v1072 = vld [vmem:[%s835] sm:$0x1]
        %v1074 = vlaneseq
        %v1075 = vshrl.u32 %v1074, 7
        %v1076 = vsub.s32 0, %v1075
        %v1077 = vrot.slane %v1072, %v1076
        %v1095 = vunpack.c.l.b16 %v1056
        %v1096 = vunpack.c.l.b16 %v1057
        %v1097 = vunpack.c.l.b16 %v1058
        %v1098 = vunpack.c.l.b16 %v1059
        %v1099 = vunpack.c.l.b16 %v1060
        %v1100 = vunpack.c.l.b16 %v1061
        %v1101 = vunpack.c.l.b16 %v1062
        %v1102 = vunpack.c.l.b16 %v1063
        %v1103 = vunpack.c.l.b16 %v1064
        %v1104 = vunpack.c.l.b16 %v1065
        %v1105 = vunpack.c.l.b16 %v1066
        %v1106 = vunpack.c.l.b16 %v1067
        %v1107 = vunpack.c.l.b16 %v1068
        %v1108 = vunpack.c.l.b16 %v1069
        %v1109 = vunpack.c.l.b16 %v1070
        %v1110 = vunpack.c.l.b16 %v1071
        %v1111 = vpack.c.b16 %v1096, %v1095
        %v1112 = vpack.c.b16 %v1098, %v1097
        %v1113 = vpack.c.b16 %v1100, %v1099
        %v1114 = vpack.c.b16 %v1102, %v1101
        %v1115 = vpack.c.b16 %v1104, %v1103
        %v1116 = vpack.c.b16 %v1106, %v1105
        %v1117 = vpack.c.b16 %v1108, %v1107
        %v1118 = vpack.c.b16 %v1110, %v1109
        %1127 = vmatprep.subr.bf16.mxu0 0
        %1128 = vmatpush1.bf16.msra.mxu0 %v1111
        %1129 = vmatprep.subr.bf16.mxu0 0
        %1130 = vmatpush1.bf16.msra.mxu0 %v1112
        %1131 = vmatprep.subr.bf16.mxu0 0
        %1132 = vmatpush1.bf16.msra.mxu0 %v1113
        %1133 = vmatprep.subr.bf16.mxu0 0
        %1134 = vmatpush1.bf16.msra.mxu0 %v1114
        %1135 = vmatprep.subr.bf16.mxu0 0
        %1136 = vmatpush1.bf16.msra.mxu0 %v1115
        %1137 = vmatprep.subr.bf16.mxu0 0
        %1138 = vmatpush1.bf16.msra.mxu0 %v1116
        %1139 = vmatprep.subr.bf16.mxu0 0
        %1140 = vmatpush1.bf16.msra.mxu0 %v1117
        %1141 = vmatprep.subr.bf16.mxu0 0
        %1142 = vmatpush1.bf16.msra.mxu0 %v1118
        %1143 = vmatprep.subr.bf16.mxu0 0
        %1144 = vmatpush1.bf16.msra.mxu0 0
        %1145 = vmatprep.subr.bf16.mxu0 0
        %1146 = vmatpush1.bf16.msra.mxu0 0
        %1147 = vmatprep.subr.bf16.mxu0 0
        %1148 = vmatpush1.bf16.msra.mxu0 0
        %1149 = vmatprep.subr.bf16.mxu0 0
        %1150 = vmatpush1.bf16.msra.mxu0 0
        %1151 = vmatprep.subr.bf16.mxu0 0
        %1152 = vmatpush1.bf16.msra.mxu0 0
        %1153 = vmatprep.subr.bf16.mxu0 0
        %1154 = vmatpush1.bf16.msra.mxu0 0
        %1155 = vmatprep.subr.bf16.mxu0 0
        %1156 = vmatpush1.bf16.msra.mxu0 0
        %1157 = vmatprep.subr.bf16.mxu0 0
        %1158 = vmatpush1.bf16.msra.mxu0 0
        %1159 = vmatprep.mubr.bf16.mxu0 0
        %1160 = vmatmul.mubr.bf16.gmra.mrb[0].mxu0 %v944
        %v1161 = vpop.f32.mrb[0].mxu0
        %v1162 = vadd.f32 %v1077, %v1161
        %v1163 = vpop.f32.mrb[0].mxu0
        %v1164 = vpop.f32.mrb[0].mxu0
        %v1165 = vpop.f32.mrb[0].mxu0
        %1166 = vdwg.mxu0
        %v1167 = vld [vmem:[%s840] sm:$0xf]
        %v1168 = vld [vmem:[%s840 + $0x4] sm:$0xf]
        %v1169 = vld [vmem:[%s840 + $0x8] sm:$0xf]
        %v1170 = vld [vmem:[%s840 + $0xc] sm:$0xf]
        %v1171 = vld [vmem:[%s840 + $0x10] sm:$0xf]
        %v1172 = vld [vmem:[%s840 + $0x14] sm:$0xf]
        %v1173 = vld [vmem:[%s840 + $0x18] sm:$0xf]
        %v1174 = vld [vmem:[%s840 + $0x1c] sm:$0xf]
        %v1175 = vld [vmem:[%s840 + $0x20] sm:$0xf]
        %v1176 = vld [vmem:[%s840 + $0x24] sm:$0xf]
        %v1177 = vld [vmem:[%s840 + $0x28] sm:$0xf]
        %v1178 = vld [vmem:[%s840 + $0x2c] sm:$0xf]
        %v1179 = vld [vmem:[%s840 + $0x30] sm:$0xf]
        %v1180 = vld [vmem:[%s840 + $0x34] sm:$0xf]
        %v1181 = vld [vmem:[%s840 + $0x38] sm:$0xf]
        %v1182 = vld [vmem:[%s840 + $0x3c] sm:$0xf]
        %v1183 = vld [vmem:[%s844] sm:$0x1]
        %v1185 = vlaneseq
        %v1186 = vshrl.u32 %v1185, 7
        %v1187 = vsub.s32 0, %v1186
        %v1188 = vrot.slane %v1183, %v1187
        %v1206 = vunpack.c.l.b16 %v1167
        %v1207 = vunpack.c.l.b16 %v1168
        %v1208 = vunpack.c.l.b16 %v1169
        %v1209 = vunpack.c.l.b16 %v1170
        %v1210 = vunpack.c.l.b16 %v1171
        %v1211 = vunpack.c.l.b16 %v1172
        %v1212 = vunpack.c.l.b16 %v1173
        %v1213 = vunpack.c.l.b16 %v1174
        %v1214 = vunpack.c.l.b16 %v1175
        %v1215 = vunpack.c.l.b16 %v1176
        %v1216 = vunpack.c.l.b16 %v1177
        %v1217 = vunpack.c.l.b16 %v1178
        %v1218 = vunpack.c.l.b16 %v1179
        %v1219 = vunpack.c.l.b16 %v1180
        %v1220 = vunpack.c.l.b16 %v1181
        %v1221 = vunpack.c.l.b16 %v1182
        %v1222 = vpack.c.b16 %v1207, %v1206
        %v1223 = vpack.c.b16 %v1209, %v1208
        %v1224 = vpack.c.b16 %v1211, %v1210
        %v1225 = vpack.c.b16 %v1213, %v1212
        %v1226 = vpack.c.b16 %v1215, %v1214
        %v1227 = vpack.c.b16 %v1217, %v1216
        %v1228 = vpack.c.b16 %v1219, %v1218
        %v1229 = vpack.c.b16 %v1221, %v1220
        %1238 = vmatprep.subr.bf16.mxu0 0
        %1239 = vmatpush1.bf16.msra.mxu0 %v1222
        %1240 = vmatprep.subr.bf16.mxu0 0
        %1241 = vmatpush1.bf16.msra.mxu0 %v1223
        %1242 = vmatprep.subr.bf16.mxu0 0
        %1243 = vmatpush1.bf16.msra.mxu0 %v1224
        %1244 = vmatprep.subr.bf16.mxu0 0
        %1245 = vmatpush1.bf16.msra.mxu0 %v1225
        %1246 = vmatprep.subr.bf16.mxu0 0
        %1247 = vmatpush1.bf16.msra.mxu0 %v1226
        %1248 = vmatprep.subr.bf16.mxu0 0
        %1249 = vmatpush1.bf16.msra.mxu0 %v1227
        %1250 = vmatprep.subr.bf16.mxu0 0
        %1251 = vmatpush1.bf16.msra.mxu0 %v1228
        %1252 = vmatprep.subr.bf16.mxu0 0
        %1253 = vmatpush1.bf16.msra.mxu0 %v1229
        %1254 = vmatprep.subr.bf16.mxu0 0
        %1255 = vmatpush1.bf16.msra.mxu0 0
        %1256 = vmatprep.subr.bf16.mxu0 0
        %1257 = vmatpush1.bf16.msra.mxu0 0
        %1258 = vmatprep.subr.bf16.mxu0 0
        %1259 = vmatpush1.bf16.msra.mxu0 0
        %1260 = vmatprep.subr.bf16.mxu0 0
        %1261 = vmatpush1.bf16.msra.mxu0 0
        %1262 = vmatprep.subr.bf16.mxu0 0
        %1263 = vmatpush1.bf16.msra.mxu0 0
        %1264 = vmatprep.subr.bf16.mxu0 0
        %1265 = vmatpush1.bf16.msra.mxu0 0
        %1266 = vmatprep.subr.bf16.mxu0 0
        %1267 = vmatpush1.bf16.msra.mxu0 0
        %1268 = vmatprep.subr.bf16.mxu0 0
        %1269 = vmatpush1.bf16.msra.mxu0 0
        %1270 = vmatprep.mubr.bf16.mxu0 0
        %1271 = vmatmul.mubr.bf16.gmra.mrb[0].mxu0 %v944
        %v1272 = vpop.f32.mrb[0].mxu0
        %v1273 = vadd.f32 %v1188, %v1272
        %v1274 = vpop.f32.mrb[0].mxu0
        %v1275 = vpop.f32.mrb[0].mxu0
        %v1276 = vpop.f32.mrb[0].mxu0
        %1277 = vdwg.mxu0
        %v1278 = vpack.c.bf16 %v1051, %v1051
        %v1279 = vpack.c.bf16 %v1162, %v1162
        %vm1280 = vcmask 523264
        %v1282 = vsel %vm1280, %v1278, 0
        %v1285 = vsel %vm1280, %v1279, 0
        %1287 = vmatprep.subr.bf16.mxu0 0
        %1288 = vmatpush1.bf16.xpose.msra.mxu0 %v1285
        %1289 = vmatprep.subr.bf16.mxu0 0
        %1290 = vmatpush1.bf16.xpose.msra.mxu0 0
        %1291 = vmatprep.subr.bf16.mxu0 0
        %1292 = vmatpush1.bf16.xpose.msra.mxu0 0
        %1293 = vmatprep.subr.bf16.mxu0 0
        %1294 = vmatpush1.bf16.xpose.msra.mxu0 0
        %1295 = vmatprep.subr.bf16.mxu0 0
        %1296 = vmatpush1.bf16.xpose.msra.mxu0 0
        %1297 = vmatprep.subr.bf16.mxu0 0
        %1298 = vmatpush1.bf16.xpose.msra.mxu0 0
        %1299 = vmatprep.subr.bf16.mxu0 0
        %1300 = vmatpush1.bf16.xpose.msra.mxu0 0
        %1301 = vmatprep.subr.bf16.mxu0 0
        %1302 = vmatpush1.bf16.xpose.msra.mxu0 0
        %1303 = vmatprep.subr.bf16.mxu0 0
        %1304 = vmatpush1.bf16.xpose.msra.mxu0 0
        %1305 = vmatprep.subr.bf16.mxu0 0
        %1306 = vmatpush1.bf16.xpose.msra.mxu0 0
        %1307 = vmatprep.subr.bf16.mxu0 0
        %1308 = vmatpush1.bf16.xpose.msra.mxu0 0
        %1309 = vmatprep.subr.bf16.mxu0 0
        %1310 = vmatpush1.bf16.xpose.msra.mxu0 0
        %1311 = vmatprep.subr.bf16.mxu0 0
        %1312 = vmatpush1.bf16.xpose.msra.mxu0 0
        %1313 = vmatprep.subr.bf16.mxu0 0
        %1314 = vmatpush1.bf16.xpose.msra.mxu0 0
        %1315 = vmatprep.subr.bf16.mxu0 0
        %1316 = vmatpush1.bf16.xpose.msra.mxu0 0
        %1317 = vmatprep.subr.bf16.mxu0 0
        %1318 = vmatpush1.bf16.xpose.msra.mxu0 0
        %1319 = vmatprep.mubr.bf16.mxu0 0
        %1320 = vmatmul.mubr.bf16.gmra.mrb[0].mxu0 %v1282
        %v1321 = vpop.f32.mrb[0].mxu0
        %v1322 = vadd.f32 0.0, %v1321
        %v1323 = vpop.f32.mrb[0].mxu0
        %v1324 = vpop.f32.mrb[0].mxu0
        %v1325 = vpop.f32.mrb[0].mxu0
        %1326 = vdwg.mxu0
        %vm1327 = vcmask 64512
        %v1328 = vsel %vm1327, %v1322, -inf
        %1329 = vmax.xlane.f32.xlu0 %v1328
        %v1330 = vpop.xlane.xlu0 %1329
        %v1331 = vsub.f32 %v1322, %v1330
        %v1332 = vmul.f32 %v1331, 1.442695
        %v1333 = vpow.pop %v1332
        %v1334 = vsel %vm1327, %v1333, 0.0
        %1335 = vadd.xlane.f32.xlu0 %v1334
        %v1336 = vpop.xlane.xlu0 %1335
        %v1337 = vrcp.pop %v1336
        %v1338 = vmul.f32 %v1333, %v1337
        %v1339 = vpack.c.bf16 %v1338, %v1338
        %v1340 = vpack.c.bf16 %v1273, %v1273
        %v1342 = vsel %vm1327, %v1339, 0
        %vm1344 = vcmask 1043456
        %v1346 = vsel %vm1344, %v1340, 0
        %1348 = vmatprep.subr.bf16.mxu0 0
        %1349 = vmatpush1.bf16.msra.mxu0 %v1346
        %1350 = vmatprep.subr.bf16.mxu0 0
        %1351 = vmatpush1.bf16.msra.mxu0 0
        %1352 = vmatprep.subr.bf16.mxu0 0
        %1353 = vmatpush1.bf16.msra.mxu0 0
        %1354 = vmatprep.subr.bf16.mxu0 0
        %1355 = vmatpush1.bf16.msra.mxu0 0
        %1356 = vmatprep.subr.bf16.mxu0 0
        %1357 = vmatpush1.bf16.msra.mxu0 0
        %1358 = vmatprep.subr.bf16.mxu0 0
        %1359 = vmatpush1.bf16.msra.mxu0 0
        %1360 = vmatprep.subr.bf16.mxu0 0
        %1361 = vmatpush1.bf16.msra.mxu0 0
        %1362 = vmatprep.subr.bf16.mxu0 0
        %1363 = vmatpush1.bf16.msra.mxu0 0
        %1364 = vmatprep.subr.bf16.mxu0 0
        %1365 = vmatpush1.bf16.msra.mxu0 0
        %1366 = vmatprep.subr.bf16.mxu0 0
        %1367 = vmatpush1.bf16.msra.mxu0 0
        %1368 = vmatprep.subr.bf16.mxu0 0
        %1369 = vmatpush1.bf16.msra.mxu0 0
        %1370 = vmatprep.subr.bf16.mxu0 0
        %1371 = vmatpush1.bf16.msra.mxu0 0
        %1372 = vmatprep.subr.bf16.mxu0 0
        %1373 = vmatpush1.bf16.msra.mxu0 0
        %1374 = vmatprep.subr.bf16.mxu0 0
        %1375 = vmatpush1.bf16.msra.mxu0 0
        %1376 = vmatprep.subr.bf16.mxu0 0
        %1377 = vmatpush1.bf16.msra.mxu0 0
        %1378 = vmatprep.subr.bf16.mxu0 0
        %1379 = vmatpush1.bf16.msra.mxu0 0
        %1380 = vmatprep.mubr.bf16.mxu0 0
        %1381 = vmatmul.mubr.bf16.gmra.mrb[0].mxu0 %v1342
        %v1382 = vpop.f32.mrb[0].mxu0
        %v1383 = vadd.f32 0.0, %v1382
        %v1384 = vpop.f32.mrb[0].mxu0
        %v1385 = vpop.f32.mrb[0].mxu0
        %v1386 = vpop.f32.mrb[0].mxu0
        %1387 = vdwg.mxu0
        %v1388 = vpack.c.bf16 %v1383, %v1383
        %v1389 = vld [vmem:[%s849] sm:$0xf]
        %v1390 = vld [vmem:[%s849 + $0x4] sm:$0xf]
        %v1391 = vld [vmem:[%s849 + $0x8] sm:$0xf]
        %v1392 = vld [vmem:[%s849 + $0xc] sm:$0xf]
        %v1393 = vld [vmem:[%s849 + $0x10] sm:$0xf]
        %v1394 = vld [vmem:[%s849 + $0x14] sm:$0xf]
        %v1395 = vld [vmem:[%s849 + $0x18] sm:$0xf]
        %v1396 = vld [vmem:[%s849 + $0x1c] sm:$0xf]
        %s1397 = scalar_lea.vmem %s822, 64
        %v1398 = vld [vmem:[%s1397] sm:$0xf]
        %v1399 = vld [vmem:[%s1397 + $0x4] sm:$0xf]
        %v1400 = vld [vmem:[%s1397 + $0x8] sm:$0xf]
        %v1401 = vld [vmem:[%s1397 + $0xc] sm:$0xf]
        %v1402 = vld [vmem:[%s1397 + $0x10] sm:$0xf]
        %v1403 = vld [vmem:[%s1397 + $0x14] sm:$0xf]
        %v1404 = vld [vmem:[%s1397 + $0x18] sm:$0xf]
        %v1405 = vld [vmem:[%s1397 + $0x1c] sm:$0xf]
        %v1406 = vld [vmem:[%s1397 + $0x20] sm:$0xf]
        %v1407 = vld [vmem:[%s1397 + $0x24] sm:$0xf]
        %v1408 = vld [vmem:[%s1397 + $0x28] sm:$0xf]
        %v1409 = vld [vmem:[%s1397 + $0x2c] sm:$0xf]
        %v1410 = vld [vmem:[%s1397 + $0x30] sm:$0xf]
        %v1411 = vld [vmem:[%s1397 + $0x34] sm:$0xf]
        %v1412 = vld [vmem:[%s1397 + $0x38] sm:$0xf]
        %v1413 = vld [vmem:[%s1397 + $0x3c] sm:$0xf]
        %s1414 = scalar_lea.vmem %s826, 1
        %v1415 = vld [vmem:[%s1414] sm:$0x1]
        %v1417 = vlaneseq
        %v1418 = vshrl.u32 %v1417, 7
        %v1419 = vsub.s32 0, %v1418
        %v1420 = vrot.slane %v1415, %v1419
        %v1438 = vunpack.c.l.b16 %v1398
        %v1439 = vunpack.c.l.b16 %v1399
        %v1440 = vunpack.c.l.b16 %v1400
        %v1441 = vunpack.c.l.b16 %v1401
        %v1442 = vunpack.c.l.b16 %v1402
        %v1443 = vunpack.c.l.b16 %v1403
        %v1444 = vunpack.c.l.b16 %v1404
        %v1445 = vunpack.c.l.b16 %v1405
        %v1446 = vunpack.c.l.b16 %v1406
        %v1447 = vunpack.c.l.b16 %v1407
        %v1448 = vunpack.c.l.b16 %v1408
        %v1449 = vunpack.c.l.b16 %v1409
        %v1450 = vunpack.c.l.b16 %v1410
        %v1451 = vunpack.c.l.b16 %v1411
        %v1452 = vunpack.c.l.b16 %v1412
        %v1453 = vunpack.c.l.b16 %v1413
        %v1454 = vpack.c.b16 %v1439, %v1438
        %v1455 = vpack.c.b16 %v1441, %v1440
        %v1456 = vpack.c.b16 %v1443, %v1442
        %v1457 = vpack.c.b16 %v1445, %v1444
        %v1458 = vpack.c.b16 %v1447, %v1446
        %v1459 = vpack.c.b16 %v1449, %v1448
        %v1460 = vpack.c.b16 %v1451, %v1450
        %v1461 = vpack.c.b16 %v1453, %v1452
        %1470 = vmatprep.subr.bf16.mxu0 0
        %1471 = vmatpush1.bf16.msra.mxu0 %v1454
        %1472 = vmatprep.subr.bf16.mxu0 0
        %1473 = vmatpush1.bf16.msra.mxu0 %v1455
        %1474 = vmatprep.subr.bf16.mxu0 0
        %1475 = vmatpush1.bf16.msra.mxu0 %v1456
        %1476 = vmatprep.subr.bf16.mxu0 0
        %1477 = vmatpush1.bf16.msra.mxu0 %v1457
        %1478 = vmatprep.subr.bf16.mxu0 0
        %1479 = vmatpush1.bf16.msra.mxu0 %v1458
        %1480 = vmatprep.subr.bf16.mxu0 0
        %1481 = vmatpush1.bf16.msra.mxu0 %v1459
        %1482 = vmatprep.subr.bf16.mxu0 0
        %1483 = vmatpush1.bf16.msra.mxu0 %v1460
        %1484 = vmatprep.subr.bf16.mxu0 0
        %1485 = vmatpush1.bf16.msra.mxu0 %v1461
        %1486 = vmatprep.subr.bf16.mxu0 0
        %1487 = vmatpush1.bf16.msra.mxu0 0
        %1488 = vmatprep.subr.bf16.mxu0 0
        %1489 = vmatpush1.bf16.msra.mxu0 0
        %1490 = vmatprep.subr.bf16.mxu0 0
        %1491 = vmatpush1.bf16.msra.mxu0 0
        %1492 = vmatprep.subr.bf16.mxu0 0
        %1493 = vmatpush1.bf16.msra.mxu0 0
        %1494 = vmatprep.subr.bf16.mxu0 0
        %1495 = vmatpush1.bf16.msra.mxu0 0
        %1496 = vmatprep.subr.bf16.mxu0 0
        %1497 = vmatpush1.bf16.msra.mxu0 0
        %1498 = vmatprep.subr.bf16.mxu0 0
        %1499 = vmatpush1.bf16.msra.mxu0 0
        %1500 = vmatprep.subr.bf16.mxu0 0
        %1501 = vmatpush1.bf16.msra.mxu0 0
        %1502 = vmatprep.mubr.bf16.mxu0 0
        %1503 = vmatmul.mubr.bf16.gmra.mrb[0].mxu0 %v944
        %v1504 = vpop.f32.mrb[0].mxu0
        %v1505 = vadd.f32 %v1420, %v1504
        %v1506 = vpop.f32.mrb[0].mxu0
        %v1507 = vpop.f32.mrb[0].mxu0
        %v1508 = vpop.f32.mrb[0].mxu0
        %1509 = vdwg.mxu0
        %s1510 = scalar_lea.vmem %s831, 64
        %v1511 = vld [vmem:[%s1510] sm:$0xf]
        %v1512 = vld [vmem:[%s1510 + $0x4] sm:$0xf]
        %v1513 = vld [vmem:[%s1510 + $0x8] sm:$0xf]
        %v1514 = vld [vmem:[%s1510 + $0xc] sm:$0xf]
        %v1515 = vld [vmem:[%s1510 + $0x10] sm:$0xf]
        %v1516 = vld [vmem:[%s1510 + $0x14] sm:$0xf]
        %v1517 = vld [vmem:[%s1510 + $0x18] sm:$0xf]
        %v1518 = vld [vmem:[%s1510 + $0x1c] sm:$0xf]
        %v1519 = vld [vmem:[%s1510 + $0x20] sm:$0xf]
        %v1520 = vld [vmem:[%s1510 + $0x24] sm:$0xf]
        %v1521 = vld [vmem:[%s1510 + $0x28] sm:$0xf]
        %v1522 = vld [vmem:[%s1510 + $0x2c] sm:$0xf]
        %v1523 = vld [vmem:[%s1510 + $0x30] sm:$0xf]
        %v1524 = vld [vmem:[%s1510 + $0x34] sm:$0xf]
        %v1525 = vld [vmem:[%s1510 + $0x38] sm:$0xf]
        %v1526 = vld [vmem:[%s1510 + $0x3c] sm:$0xf]
        %s1527 = scalar_lea.vmem %s835, 1
        %v1528 = vld [vmem:[%s1527] sm:$0x1]
        %v1530 = vlaneseq
        %v1531 = vshrl.u32 %v1530, 7
        %v1532 = vsub.s32 0, %v1531
        %v1533 = vrot.slane %v1528, %v1532
        %v1551 = vunpack.c.l.b16 %v1511
        %v1552 = vunpack.c.l.b16 %v1512
        %v1553 = vunpack.c.l.b16 %v1513
        %v1554 = vunpack.c.l.b16 %v1514
        %v1555 = vunpack.c.l.b16 %v1515
        %v1556 = vunpack.c.l.b16 %v1516
        %v1557 = vunpack.c.l.b16 %v1517
        %v1558 = vunpack.c.l.b16 %v1518
        %v1559 = vunpack.c.l.b16 %v1519
        %v1560 = vunpack.c.l.b16 %v1520
        %v1561 = vunpack.c.l.b16 %v1521
        %v1562 = vunpack.c.l.b16 %v1522
        %v1563 = vunpack.c.l.b16 %v1523
        %v1564 = vunpack.c.l.b16 %v1524
        %v1565 = vunpack.c.l.b16 %v1525
        %v1566 = vunpack.c.l.b16 %v1526
        %v1567 = vpack.c.b16 %v1552, %v1551
        %v1568 = vpack.c.b16 %v1554, %v1553
        %v1569 = vpack.c.b16 %v1556, %v1555
        %v1570 = vpack.c.b16 %v1558, %v1557
        %v1571 = vpack.c.b16 %v1560, %v1559
        %v1572 = vpack.c.b16 %v1562, %v1561
        %v1573 = vpack.c.b16 %v1564, %v1563
        %v1574 = vpack.c.b16 %v1566, %v1565
        %1583 = vmatprep.subr.bf16.mxu0 0
        %1584 = vmatpush1.bf16.msra.mxu0 %v1567
        %1585 = vmatprep.subr.bf16.mxu0 0
        %1586 = vmatpush1.bf16.msra.mxu0 %v1568
        %1587 = vmatprep.subr.bf16.mxu0 0
        %1588 = vmatpush1.bf16.msra.mxu0 %v1569
        %1589 = vmatprep.subr.bf16.mxu0 0
        %1590 = vmatpush1.bf16.msra.mxu0 %v1570
        %1591 = vmatprep.subr.bf16.mxu0 0
        %1592 = vmatpush1.bf16.msra.mxu0 %v1571
        %1593 = vmatprep.subr.bf16.mxu0 0
        %1594 = vmatpush1.bf16.msra.mxu0 %v1572
        %1595 = vmatprep.subr.bf16.mxu0 0
        %1596 = vmatpush1.bf16.msra.mxu0 %v1573
        %1597 = vmatprep.subr.bf16.mxu0 0
        %1598 = vmatpush1.bf16.msra.mxu0 %v1574
        %1599 = vmatprep.subr.bf16.mxu0 0
        %1600 = vmatpush1.bf16.msra.mxu0 0
        %1601 = vmatprep.subr.bf16.mxu0 0
        %1602 = vmatpush1.bf16.msra.mxu0 0
        %1603 = vmatprep.subr.bf16.mxu0 0
        %1604 = vmatpush1.bf16.msra.mxu0 0
        %1605 = vmatprep.subr.bf16.mxu0 0
        %1606 = vmatpush1.bf16.msra.mxu0 0
        %1607 = vmatprep.subr.bf16.mxu0 0
        %1608 = vmatpush1.bf16.msra.mxu0 0
        %1609 = vmatprep.subr.bf16.mxu0 0
        %1610 = vmatpush1.bf16.msra.mxu0 0
        %1611 = vmatprep.subr.bf16.mxu0 0
        %1612 = vmatpush1.bf16.msra.mxu0 0
        %1613 = vmatprep.subr.bf16.mxu0 0
        %1614 = vmatpush1.bf16.msra.mxu0 0
        %1615 = vmatprep.mubr.bf16.mxu0 0
        %1616 = vmatmul.mubr.bf16.gmra.mrb[0].mxu0 %v944
        %v1617 = vpop.f32.mrb[0].mxu0
        %v1618 = vadd.f32 %v1533, %v1617
        %v1619 = vpop.f32.mrb[0].mxu0
        %v1620 = vpop.f32.mrb[0].mxu0
        %v1621 = vpop.f32.mrb[0].mxu0
        %1622 = vdwg.mxu0
        %s1623 = scalar_lea.vmem %s840, 64
        %v1624 = vld [vmem:[%s1623] sm:$0xf]
        %v1625 = vld [vmem:[%s1623 + $0x4] sm:$0xf]
        %v1626 = vld [vmem:[%s1623 + $0x8] sm:$0xf]
        %v1627 = vld [vmem:[%s1623 + $0xc] sm:$0xf]
        %v1628 = vld [vmem:[%s1623 + $0x10] sm:$0xf]
        %v1629 = vld [vmem:[%s1623 + $0x14] sm:$0xf]
        %v1630 = vld [vmem:[%s1623 + $0x18] sm:$0xf]
        %v1631 = vld [vmem:[%s1623 + $0x1c] sm:$0xf]
        %v1632 = vld [vmem:[%s1623 + $0x20] sm:$0xf]
        %v1633 = vld [vmem:[%s1623 + $0x24] sm:$0xf]
        %v1634 = vld [vmem:[%s1623 + $0x28] sm:$0xf]
        %v1635 = vld [vmem:[%s1623 + $0x2c] sm:$0xf]
        %v1636 = vld [vmem:[%s1623 + $0x30] sm:$0xf]
        %v1637 = vld [vmem:[%s1623 + $0x34] sm:$0xf]
        %v1638 = vld [vmem:[%s1623 + $0x38] sm:$0xf]
        %v1639 = vld [vmem:[%s1623 + $0x3c] sm:$0xf]
        %s1640 = scalar_lea.vmem %s844, 1
        %v1641 = vld [vmem:[%s1640] sm:$0x1]
        %v1643 = vlaneseq
        %v1644 = vshrl.u32 %v1643, 7
        %v1645 = vsub.s32 0, %v1644
        %v1646 = vrot.slane %v1641, %v1645
        %v1664 = vunpack.c.l.b16 %v1624
        %v1665 = vunpack.c.l.b16 %v1625
        %v1666 = vunpack.c.l.b16 %v1626
        %v1667 = vunpack.c.l.b16 %v1627
        %v1668 = vunpack.c.l.b16 %v1628
        %v1669 = vunpack.c.l.b16 %v1629
        %v1670 = vunpack.c.l.b16 %v1630
        %v1671 = vunpack.c.l.b16 %v1631
        %v1672 = vunpack.c.l.b16 %v1632
        %v1673 = vunpack.c.l.b16 %v1633
        %v1674 = vunpack.c.l.b16 %v1634
        %v1675 = vunpack.c.l.b16 %v1635
        %v1676 = vunpack.c.l.b16 %v1636
        %v1677 = vunpack.c.l.b16 %v1637
        %v1678 = vunpack.c.l.b16 %v1638
        %v1679 = vunpack.c.l.b16 %v1639
        %v1680 = vpack.c.b16 %v1665, %v1664
        %v1681 = vpack.c.b16 %v1667, %v1666
        %v1682 = vpack.c.b16 %v1669, %v1668
        %v1683 = vpack.c.b16 %v1671, %v1670
        %v1684 = vpack.c.b16 %v1673, %v1672
        %v1685 = vpack.c.b16 %v1675, %v1674
        %v1686 = vpack.c.b16 %v1677, %v1676
        %v1687 = vpack.c.b16 %v1679, %v1678
        %1696 = vmatprep.subr.bf16.mxu0 0
        %1697 = vmatpush1.bf16.msra.mxu0 %v1680
        %1698 = vmatprep.subr.bf16.mxu0 0
        %1699 = vmatpush1.bf16.msra.mxu0 %v1681
        %1700 = vmatprep.subr.bf16.mxu0 0
        %1701 = vmatpush1.bf16.msra.mxu0 %v1682
        %1702 = vmatprep.subr.bf16.mxu0 0
        %1703 = vmatpush1.bf16.msra.mxu0 %v1683
        %1704 = vmatprep.subr.bf16.mxu0 0
        %1705 = vmatpush1.bf16.msra.mxu0 %v1684
        %1706 = vmatprep.subr.bf16.mxu0 0
        %1707 = vmatpush1.bf16.msra.mxu0 %v1685
        %1708 = vmatprep.subr.bf16.mxu0 0
        %1709 = vmatpush1.bf16.msra.mxu0 %v1686
        %1710 = vmatprep.subr.bf16.mxu0 0
        %1711 = vmatpush1.bf16.msra.mxu0 %v1687
        %1712 = vmatprep.subr.bf16.mxu0 0
        %1713 = vmatpush1.bf16.msra.mxu0 0
        %1714 = vmatprep.subr.bf16.mxu0 0
        %1715 = vmatpush1.bf16.msra.mxu0 0
        %1716 = vmatprep.subr.bf16.mxu0 0
        %1717 = vmatpush1.bf16.msra.mxu0 0
        %1718 = vmatprep.subr.bf16.mxu0 0
        %1719 = vmatpush1.bf16.msra.mxu0 0
        %1720 = vmatprep.subr.bf16.mxu0 0
        %1721 = vmatpush1.bf16.msra.mxu0 0
        %1722 = vmatprep.subr.bf16.mxu0 0
        %1723 = vmatpush1.bf16.msra.mxu0 0
        %1724 = vmatprep.subr.bf16.mxu0 0
        %1725 = vmatpush1.bf16.msra.mxu0 0
        %1726 = vmatprep.subr.bf16.mxu0 0
        %1727 = vmatpush1.bf16.msra.mxu0 0
        %1728 = vmatprep.mubr.bf16.mxu0 0
        %1729 = vmatmul.mubr.bf16.gmra.mrb[0].mxu0 %v944
        %v1730 = vpop.f32.mrb[0].mxu0
        %v1731 = vadd.f32 %v1646, %v1730
        %v1732 = vpop.f32.mrb[0].mxu0
        %v1733 = vpop.f32.mrb[0].mxu0
        %v1734 = vpop.f32.mrb[0].mxu0
        %1735 = vdwg.mxu0
        %v1736 = vpack.c.bf16 %v1505, %v1505
        %v1737 = vpack.c.bf16 %v1618, %v1618
        %v1739 = vsel %vm1280, %v1736, 0
        %v1742 = vsel %vm1280, %v1737, 0
        %1744 = vmatprep.subr.bf16.mxu0 0
        %1745 = vmatpush1.bf16.xpose.msra.mxu0 %v1742
        %1746 = vmatprep.subr.bf16.mxu0 0
        %1747 = vmatpush1.bf16.xpose.msra.mxu0 0
        %1748 = vmatprep.subr.bf16.mxu0 0
        %1749 = vmatpush1.bf16.xpose.msra.mxu0 0
        %1750 = vmatprep.subr.bf16.mxu0 0
        %1751 = vmatpush1.bf16.xpose.msra.mxu0 0
        %1752 = vmatprep.subr.bf16.mxu0 0
        %1753 = vmatpush1.bf16.xpose.msra.mxu0 0
        %1754 = vmatprep.subr.bf16.mxu0 0
        %1755 = vmatpush1.bf16.xpose.msra.mxu0 0
        %1756 = vmatprep.subr.bf16.mxu0 0
        %1757 = vmatpush1.bf16.xpose.msra.mxu0 0
        %1758 = vmatprep.subr.bf16.mxu0 0
        %1759 = vmatpush1.bf16.xpose.msra.mxu0 0
        %1760 = vmatprep.subr.bf16.mxu0 0
        %1761 = vmatpush1.bf16.xpose.msra.mxu0 0
        %1762 = vmatprep.subr.bf16.mxu0 0
        %1763 = vmatpush1.bf16.xpose.msra.mxu0 0
        %1764 = vmatprep.subr.bf16.mxu0 0
        %1765 = vmatpush1.bf16.xpose.msra.mxu0 0
        %1766 = vmatprep.subr.bf16.mxu0 0
        %1767 = vmatpush1.bf16.xpose.msra.mxu0 0
        %1768 = vmatprep.subr.bf16.mxu0 0
        %1769 = vmatpush1.bf16.xpose.msra.mxu0 0
        %1770 = vmatprep.subr.bf16.mxu0 0
        %1771 = vmatpush1.bf16.xpose.msra.mxu0 0
        %1772 = vmatprep.subr.bf16.mxu0 0
        %1773 = vmatpush1.bf16.xpose.msra.mxu0 0
        %1774 = vmatprep.subr.bf16.mxu0 0
        %1775 = vmatpush1.bf16.xpose.msra.mxu0 0
        %1776 = vmatprep.mubr.bf16.mxu0 0
        %1777 = vmatmul.mubr.bf16.gmra.mrb[0].mxu0 %v1739
        %v1778 = vpop.f32.mrb[0].mxu0
        %v1779 = vadd.f32 0.0, %v1778
        %v1780 = vpop.f32.mrb[0].mxu0
        %v1781 = vpop.f32.mrb[0].mxu0
        %v1782 = vpop.f32.mrb[0].mxu0
        %1783 = vdwg.mxu0
        %v1784 = vsel %vm1327, %v1779, -inf
        %1785 = vmax.xlane.f32.xlu0 %v1784
        %v1786 = vpop.xlane.xlu0 %1785
        %v1787 = vsub.f32 %v1779, %v1786
        %v1788 = vmul.f32 %v1787, 1.442695
        %v1789 = vpow.pop %v1788
        %v1790 = vsel %vm1327, %v1789, 0.0
        %1791 = vadd.xlane.f32.xlu0 %v1790
        %v1792 = vpop.xlane.xlu0 %1791
        %v1793 = vrcp.pop %v1792
        %v1794 = vmul.f32 %v1789, %v1793
        %v1795 = vpack.c.bf16 %v1794, %v1794
        %v1796 = vpack.c.bf16 %v1731, %v1731
        %v1798 = vsel %vm1327, %v1795, 0
        %v1801 = vsel %vm1344, %v1796, 0
        %1803 = vmatprep.subr.bf16.mxu0 0
        %1804 = vmatpush1.bf16.msra.mxu0 %v1801
        %1805 = vmatprep.subr.bf16.mxu0 0
        %1806 = vmatpush1.bf16.msra.mxu0 0
        %1807 = vmatprep.subr.bf16.mxu0 0
        %1808 = vmatpush1.bf16.msra.mxu0 0
        %1809 = vmatprep.subr.bf16.mxu0 0
        %1810 = vmatpush1.bf16.msra.mxu0 0
        %1811 = vmatprep.subr.bf16.mxu0 0
        %1812 = vmatpush1.bf16.msra.mxu0 0
        %1813 = vmatprep.subr.bf16.mxu0 0
        %1814 = vmatpush1.bf16.msra.mxu0 0
        %1815 = vmatprep.subr.bf16.mxu0 0
        %1816 = vmatpush1.bf16.msra.mxu0 0
        %1817 = vmatprep.subr.bf16.mxu0 0
        %1818 = vmatpush1.bf16.msra.mxu0 0
        %1819 = vmatprep.subr.bf16.mxu0 0
        %1820 = vmatpush1.bf16.msra.mxu0 0
        %1821 = vmatprep.subr.bf16.mxu0 0
        %1822 = vmatpush1.bf16.msra.mxu0 0
        %1823 = vmatprep.subr.bf16.mxu0 0
        %1824 = vmatpush1.bf16.msra.mxu0 0
        %1825 = vmatprep.subr.bf16.mxu0 0
        %1826 = vmatpush1.bf16.msra.mxu0 0
        %1827 = vmatprep.subr.bf16.mxu0 0
        %1828 = vmatpush1.bf16.msra.mxu0 0
        %1829 = vmatprep.subr.bf16.mxu0 0
        %1830 = vmatpush1.bf16.msra.mxu0 0
        %1831 = vmatprep.subr.bf16.mxu0 0
        %1832 = vmatpush1.bf16.msra.mxu0 0
        %1833 = vmatprep.subr.bf16.mxu0 0
        %1834 = vmatpush1.bf16.msra.mxu0 0
        %1835 = vmatprep.mubr.bf16.mxu0 0
        %1836 = vmatmul.mubr.bf16.gmra.mrb[0].mxu0 %v1798
        %v1837 = vpop.f32.mrb[0].mxu0
        %v1838 = vadd.f32 0.0, %v1837
        %v1839 = vpop.f32.mrb[0].mxu0
        %v1840 = vpop.f32.mrb[0].mxu0
        %v1841 = vpop.f32.mrb[0].mxu0
        %1842 = vdwg.mxu0
        %v1843 = vpack.c.bf16 %v1838, %v1838
        %s1844 = scalar_lea.vmem %s849, 32
        %v1845 = vld [vmem:[%s1844] sm:$0xf]
        %v1846 = vld [vmem:[%s1844 + $0x4] sm:$0xf]
        %v1847 = vld [vmem:[%s1844 + $0x8] sm:$0xf]
        %v1848 = vld [vmem:[%s1844 + $0xc] sm:$0xf]
        %v1849 = vld [vmem:[%s1844 + $0x10] sm:$0xf]
        %v1850 = vld [vmem:[%s1844 + $0x14] sm:$0xf]
        %v1851 = vld [vmem:[%s1844 + $0x18] sm:$0xf]
        %v1852 = vld [vmem:[%s1844 + $0x1c] sm:$0xf]
        %v1861 = vunpack.c.l.b16 %v1845
        %v1862 = vunpack.c.l.b16 %v1846
        %v1863 = vunpack.c.l.b16 %v1847
        %v1864 = vunpack.c.l.b16 %v1848
        %v1865 = vunpack.c.l.b16 %v1849
        %v1866 = vunpack.c.l.b16 %v1850
        %v1867 = vunpack.c.l.b16 %v1851
        %v1868 = vunpack.c.l.b16 %v1852
        %v1869 = vpack.c.b16 %v1862, %v1861
        %v1870 = vpack.c.b16 %v1864, %v1863
        %v1871 = vpack.c.b16 %v1866, %v1865
        %v1872 = vpack.c.b16 %v1868, %v1867
        %v1878 = vsel %vm1280, %v1843, 0
        %1880 = vmatprep.subr.bf16.mxu0 0
        %1881 = vmatpush1.bf16.msra.mxu0 %v1869
        %1882 = vmatprep.subr.bf16.mxu0 0
        %1883 = vmatpush1.bf16.msra.mxu0 %v1870
        %1884 = vmatprep.subr.bf16.mxu0 0
        %1885 = vmatpush1.bf16.msra.mxu0 %v1871
        %1886 = vmatprep.subr.bf16.mxu0 0
        %1887 = vmatpush1.bf16.msra.mxu0 %v1872
        %1888 = vmatprep.subr.bf16.mxu0 0
        %1889 = vmatpush1.bf16.msra.mxu0 0
        %1890 = vmatprep.subr.bf16.mxu0 0
        %1891 = vmatpush1.bf16.msra.mxu0 0
        %1892 = vmatprep.subr.bf16.mxu0 0
        %1893 = vmatpush1.bf16.msra.mxu0 0
        %1894 = vmatprep.subr.bf16.mxu0 0
        %1895 = vmatpush1.bf16.msra.mxu0 0
        %1896 = vmatprep.subr.bf16.mxu0 0
        %1897 = vmatpush1.bf16.msra.mxu0 0
        %1898 = vmatprep.subr.bf16.mxu0 0
        %1899 = vmatpush1.bf16.msra.mxu0 0
        %1900 = vmatprep.subr.bf16.mxu0 0
        %1901 = vmatpush1.bf16.msra.mxu0 0
        %1902 = vmatprep.subr.bf16.mxu0 0
        %1903 = vmatpush1.bf16.msra.mxu0 0
        %1904 = vmatprep.subr.bf16.mxu0 0
        %1905 = vmatpush1.bf16.msra.mxu0 0
        %1906 = vmatprep.subr.bf16.mxu0 0
        %1907 = vmatpush1.bf16.msra.mxu0 0
        %1908 = vmatprep.subr.bf16.mxu0 0
        %1909 = vmatpush1.bf16.msra.mxu0 0
        %1910 = vmatprep.subr.bf16.mxu0 0
        %1911 = vmatpush1.bf16.msra.mxu0 0
        %1912 = vmatprep.mubr.bf16.mxu0 0
        %1913 = vmatmul.mubr.bf16.gmra.mrb[0].mxu0 %v1878
        %v1914 = vpop.f32.mrb[0].mxu0
        %v1915 = vadd.f32 0.0, %v1914
        %v1916 = vpop.f32.mrb[0].mxu0
        %v1917 = vpop.f32.mrb[0].mxu0
        %v1918 = vpop.f32.mrb[0].mxu0
        %1919 = vdwg.mxu0
        %v1928 = vunpack.c.l.b16 %v1389
        %v1929 = vunpack.c.l.b16 %v1390
        %v1930 = vunpack.c.l.b16 %v1391
        %v1931 = vunpack.c.l.b16 %v1392
        %v1932 = vunpack.c.l.b16 %v1393
        %v1933 = vunpack.c.l.b16 %v1394
        %v1934 = vunpack.c.l.b16 %v1395
        %v1935 = vunpack.c.l.b16 %v1396
        %v1936 = vpack.c.b16 %v1929, %v1928
        %v1937 = vpack.c.b16 %v1931, %v1930
        %v1938 = vpack.c.b16 %v1933, %v1932
        %v1939 = vpack.c.b16 %v1935, %v1934
        %v1945 = vsel %vm1280, %v1388, 0
        %1947 = vmatprep.subr.bf16.mxu0 0
        %1948 = vmatpush1.bf16.msra.mxu0 %v1936
        %1949 = vmatprep.subr.bf16.mxu0 0
        %1950 = vmatpush1.bf16.msra.mxu0 %v1937
        %1951 = vmatprep.subr.bf16.mxu0 0
        %1952 = vmatpush1.bf16.msra.mxu0 %v1938
        %1953 = vmatprep.subr.bf16.mxu0 0
        %1954 = vmatpush1.bf16.msra.mxu0 %v1939
        %1955 = vmatprep.subr.bf16.mxu0 0
        %1956 = vmatpush1.bf16.msra.mxu0 0
        %1957 = vmatprep.subr.bf16.mxu0 0
        %1958 = vmatpush1.bf16.msra.mxu0 0
        %1959 = vmatprep.subr.bf16.mxu0 0
        %1960 = vmatpush1.bf16.msra.mxu0 0
        %1961 = vmatprep.subr.bf16.mxu0 0
        %1962 = vmatpush1.bf16.msra.mxu0 0
        %1963 = vmatprep.subr.bf16.mxu0 0
        %1964 = vmatpush1.bf16.msra.mxu0 0
        %1965 = vmatprep.subr.bf16.mxu0 0
        %1966 = vmatpush1.bf16.msra.mxu0 0
        %1967 = vmatprep.subr.bf16.mxu0 0
        %1968 = vmatpush1.bf16.msra.mxu0 0
        %1969 = vmatprep.subr.bf16.mxu0 0
        %1970 = vmatpush1.bf16.msra.mxu0 0
        %1971 = vmatprep.subr.bf16.mxu0 0
        %1972 = vmatpush1.bf16.msra.mxu0 0
        %1973 = vmatprep.subr.bf16.mxu0 0
        %1974 = vmatpush1.bf16.msra.mxu0 0
        %1975 = vmatprep.subr.bf16.mxu0 0
        %1976 = vmatpush1.bf16.msra.mxu0 0
        %1977 = vmatprep.subr.bf16.mxu0 0
        %1978 = vmatpush1.bf16.msra.mxu0 0
        %1979 = vmatprep.mubr.bf16.mxu0 0
        %1980 = vmatmul.mubr.bf16.gmra.mrb[0].mxu0 %v1945
        %v1981 = vpop.f32.mrb[0].mxu0
        %v1982 = vadd.f32 %v1915, %v1981
        %v1983 = vpop.f32.mrb[0].mxu0
        %v1984 = vpop.f32.mrb[0].mxu0
        %v1985 = vpop.f32.mrb[0].mxu0
        %1986 = vdwg.mxu0
        %v1987 = vld [vmem:[%s852] sm:$0x1]
        %v1989 = vlaneseq
        %v1990 = vshrl.u32 %v1989, 7
        %v1991 = vsub.s32 0, %v1990
        %v1992 = vrot.slane %v1987, %v1991
        %v1994 = vadd.f32 %v1982, %v1992
        %v1995 = vadd.f32 %v943, %v1994
        %v1996 = vld [vmem:[%s855] sm:$0x1]
        %v1997 = vld [vmem:[%s858] sm:$0x1]
        %1998 = vadd.xlane.f32.xlu0 %v1995
        %v1999 = vpop.xlane.xlu0 %1998
        %v2000 = vrcp.pop 128.0
        %v2001 = vmul.f32 %v1999, %v2000
        %v2002 = vmul.f32 %v1995, %v1995
        %2003 = vadd.xlane.f32.xlu0 %v2002
        %v2004 = vpop.xlane.xlu0 %2003
        %v2005 = vmul.f32 %v2004, %v2000
        %v2006 = vmul.f32 %v2001, %v2001
        %v2007 = vsub.f32 %v2005, %v2006
        %v2008 = vsub.f32 %v1995, %v2001
        %v2009 = vadd.f32 %v2007, 1e-05
        %v2010 = vrsqrt.pop %v2009
        %v2011 = vmul.f32 %v2008, %v2010
        %v2013 = vlaneseq
        %v2014 = vshrl.u32 %v2013, 7
        %v2015 = vsub.s32 0, %v2014
        %v2016 = vrot.slane %v1996, %v2015
        %v2018 = vmul.f32 %v2011, %v2016
        %v2020 = vlaneseq
        %v2021 = vshrl.u32 %v2020, 7
        %v2022 = vsub.s32 0, %v2021
        %v2023 = vrot.slane %v1997, %v2022
        %v2025 = vadd.f32 %v2018, %v2023
        %v2026 = vpack.c.bf16 %v2025, %v2025
        %v2027 = vld [vmem:[%s863] sm:$0xff]
        %v2028 = vld [vmem:[%s863 + $0x8] sm:$0xff]
        %v2029 = vld [vmem:[%s863 + $0x10] sm:$0xff]
        %v2030 = vld [vmem:[%s863 + $0x18] sm:$0xff]
        %v2031 = vld [vmem:[%s863 + $0x20] sm:$0xff]
        %v2032 = vld [vmem:[%s863 + $0x28] sm:$0xff]
        %v2033 = vld [vmem:[%s863 + $0x30] sm:$0xff]
        %v2034 = vld [vmem:[%s863 + $0x38] sm:$0xff]
        %v2035 = vld [vmem:[%s863 + $0x40] sm:$0xff]
        %v2036 = vld [vmem:[%s863 + $0x48] sm:$0xff]
        %v2037 = vld [vmem:[%s863 + $0x50] sm:$0xff]
        %v2038 = vld [vmem:[%s863 + $0x58] sm:$0xff]
        %v2039 = vld [vmem:[%s863 + $0x60] sm:$0xff]
        %v2040 = vld [vmem:[%s863 + $0x68] sm:$0xff]
        %v2041 = vld [vmem:[%s863 + $0x70] sm:$0xff]
        %v2042 = vld [vmem:[%s863 + $0x78] sm:$0xff]
        %v2043 = vld [vmem:[%s867] sm:$0x3]
        %v2045 = vlaneseq
        %v2046 = vshrl.u32 %v2045, 7
        %v2047 = vsub.s32 0, %v2046
        %v2048 = vrot.slane %v2043, %v2047
        %v2049 = vlaneseq
        %v2050 = vshrl.u32 %v2049, 7
        %v2051 = vsub.s32 1, %v2050
        %v2052 = vrot.slane %v2043, %v2051
        %v2071 = vunpack.c.l.b16 %v2027
        %v2072 = vunpack.c.h.b16 %v2027
        %v2073 = vunpack.c.l.b16 %v2028
        %v2074 = vunpack.c.h.b16 %v2028
        %v2075 = vunpack.c.l.b16 %v2029
        %v2076 = vunpack.c.h.b16 %v2029
        %v2077 = vunpack.c.l.b16 %v2030
        %v2078 = vunpack.c.h.b16 %v2030
        %v2079 = vunpack.c.l.b16 %v2031
        %v2080 = vunpack.c.h.b16 %v2031
        %v2081 = vunpack.c.l.b16 %v2032
        %v2082 = vunpack.c.h.b16 %v2032
        %v2083 = vunpack.c.l.b16 %v2033
        %v2084 = vunpack.c.h.b16 %v2033
        %v2085 = vunpack.c.l.b16 %v2034
        %v2086 = vunpack.c.h.b16 %v2034
        %v2087 = vunpack.c.l.b16 %v2035
        %v2088 = vunpack.c.h.b16 %v2035
        %v2089 = vunpack.c.l.b16 %v2036
        %v2090 = vunpack.c.h.b16 %v2036
        %v2091 = vunpack.c.l.b16 %v2037
        %v2092 = vunpack.c.h.b16 %v2037
        %v2093 = vunpack.c.l.b16 %v2038
        %v2094 = vunpack.c.h.b16 %v2038
        %v2095 = vunpack.c.l.b16 %v2039
        %v2096 = vunpack.c.h.b16 %v2039
        %v2097 = vunpack.c.l.b16 %v2040
        %v2098 = vunpack.c.h.b16 %v2040
        %v2099 = vunpack.c.l.b16 %v2041
        %v2100 = vunpack.c.h.b16 %v2041
        %v2101 = vunpack.c.l.b16 %v2042
        %v2102 = vunpack.c.h.b16 %v2042
        %v2103 = vpack.c.b16 %v2073, %v2071
        %v2104 = vpack.c.b16 %v2074, %v2072
        %v2105 = vpack.c.b16 %v2077, %v2075
        %v2106 = vpack.c.b16 %v2078, %v2076
        %v2107 = vpack.c.b16 %v2081, %v2079
        %v2108 = vpack.c.b16 %v2082, %v2080
        %v2109 = vpack.c.b16 %v2085, %v2083
        %v2110 = vpack.c.b16 %v2086, %v2084
        %v2111 = vpack.c.b16 %v2089, %v2087
        %v2112 = vpack.c.b16 %v2090, %v2088
        %v2113 = vpack.c.b16 %v2093, %v2091
        %v2114 = vpack.c.b16 %v2094, %v2092
        %v2115 = vpack.c.b16 %v2097, %v2095
        %v2116 = vpack.c.b16 %v2098, %v2096
        %v2117 = vpack.c.b16 %v2101, %v2099
        %v2118 = vpack.c.b16 %v2102, %v2100
        %2135 = vmatprep.subr.bf16.mxu0 %v2104
        %2136 = vmatpush1.bf16.msra.mxu0 %v2103
        %2137 = vmatprep.subr.bf16.mxu0 %v2106
        %2138 = vmatpush1.bf16.msra.mxu0 %v2105
        %2139 = vmatprep.subr.bf16.mxu0 %v2108
        %2140 = vmatpush1.bf16.msra.mxu0 %v2107
        %2141 = vmatprep.subr.bf16.mxu0 %v2110
        %2142 = vmatpush1.bf16.msra.mxu0 %v2109
        %2143 = vmatprep.subr.bf16.mxu0 %v2112
        %2144 = vmatpush1.bf16.msra.mxu0 %v2111
        %2145 = vmatprep.subr.bf16.mxu0 %v2114
        %2146 = vmatpush1.bf16.msra.mxu0 %v2113
        %2147 = vmatprep.subr.bf16.mxu0 %v2116
        %2148 = vmatpush1.bf16.msra.mxu0 %v2115
        %2149 = vmatprep.subr.bf16.mxu0 %v2118
        %2150 = vmatpush1.bf16.msra.mxu0 %v2117
        %2151 = vmatprep.subr.bf16.mxu0 0
        %2152 = vmatpush1.bf16.msra.mxu0 0
        %2153 = vmatprep.subr.bf16.mxu0 0
        %2154 = vmatpush1.bf16.msra.mxu0 0
        %2155 = vmatprep.subr.bf16.mxu0 0
        %2156 = vmatpush1.bf16.msra.mxu0 0
        %2157 = vmatprep.subr.bf16.mxu0 0
        %2158 = vmatpush1.bf16.msra.mxu0 0
        %2159 = vmatprep.subr.bf16.mxu0 0
        %2160 = vmatpush1.bf16.msra.mxu0 0
        %2161 = vmatprep.subr.bf16.mxu0 0
        %2162 = vmatpush1.bf16.msra.mxu0 0
        %2163 = vmatprep.subr.bf16.mxu0 0
        %2164 = vmatpush1.bf16.msra.mxu0 0
        %2165 = vmatprep.subr.bf16.mxu0 0
        %2166 = vmatpush1.bf16.msra.mxu0 0
        %2167 = vmatprep.mubr.bf16.mxu0 0
        %2168 = vmatmul.mubr.bf16.gmra.mrb[0].mxu0 %v2026
        %v2169 = vpop.f32.mrb[0].mxu0
        %v2170 = vadd.f32 %v2048, %v2169
        %v2171 = vpop.f32.mrb[0].mxu0
        %v2172 = vadd.f32 %v2052, %v2171
        %v2173 = vpop.f32.mrb[0].mxu0
        %v2174 = vpop.f32.mrb[0].mxu0
        %2175 = vdwg.mxu0
        %v2176 = vmax.f32 %v2170, 0.0
        %v2177 = vmax.f32 %v2172, 0.0
        %v2178 = vpack.c.bf16 %v2176, %v2176
        %v2179 = vpack.c.bf16 %v2177, %v2177
        %v2180 = vld [vmem:[%s872] sm:$0xf]
        %v2181 = vld [vmem:[%s872 + $0x4] sm:$0xf]
        %v2182 = vld [vmem:[%s872 + $0x8] sm:$0xf]
        %v2183 = vld [vmem:[%s872 + $0xc] sm:$0xf]
        %v2184 = vld [vmem:[%s872 + $0x10] sm:$0xf]
        %v2185 = vld [vmem:[%s872 + $0x14] sm:$0xf]
        %v2186 = vld [vmem:[%s872 + $0x18] sm:$0xf]
        %v2187 = vld [vmem:[%s872 + $0x1c] sm:$0xf]
        %v2188 = vld [vmem:[%s872 + $0x20] sm:$0xf]
        %v2189 = vld [vmem:[%s872 + $0x24] sm:$0xf]
        %v2190 = vld [vmem:[%s872 + $0x28] sm:$0xf]
        %v2191 = vld [vmem:[%s872 + $0x2c] sm:$0xf]
        %v2192 = vld [vmem:[%s872 + $0x30] sm:$0xf]
        %v2193 = vld [vmem:[%s872 + $0x34] sm:$0xf]
        %v2194 = vld [vmem:[%s872 + $0x38] sm:$0xf]
        %v2195 = vld [vmem:[%s872 + $0x3c] sm:$0xf]
        %v2196 = vld [vmem:[%s872 + $0x40] sm:$0xf]
        %v2197 = vld [vmem:[%s872 + $0x44] sm:$0xf]
        %v2198 = vld [vmem:[%s872 + $0x48] sm:$0xf]
        %v2199 = vld [vmem:[%s872 + $0x4c] sm:$0xf]
        %v2200 = vld [vmem:[%s872 + $0x50] sm:$0xf]
        %v2201 = vld [vmem:[%s872 + $0x54] sm:$0xf]
        %v2202 = vld [vmem:[%s872 + $0x58] sm:$0xf]
        %v2203 = vld [vmem:[%s872 + $0x5c] sm:$0xf]
        %v2204 = vld [vmem:[%s872 + $0x60] sm:$0xf]
        %v2205 = vld [vmem:[%s872 + $0x64] sm:$0xf]
        %v2206 = vld [vmem:[%s872 + $0x68] sm:$0xf]
        %v2207 = vld [vmem:[%s872 + $0x6c] sm:$0xf]
        %v2208 = vld [vmem:[%s872 + $0x70] sm:$0xf]
        %v2209 = vld [vmem:[%s872 + $0x74] sm:$0xf]
        %v2210 = vld [vmem:[%s872 + $0x78] sm:$0xf]
        %v2211 = vld [vmem:[%s872 + $0x7c] sm:$0xf]
        %v2212 = vld [vmem:[%s875] sm:$0x1]
        %v2214 = vlaneseq
        %v2215 = vshrl.u32 %v2214, 7
        %v2216 = vsub.s32 0, %v2215
        %v2217 = vrot.slane %v2212, %v2216
        %v2251 = vunpack.c.l.b16 %v2180
        %v2252 = vunpack.c.l.b16 %v2181
        %v2253 = vunpack.c.l.b16 %v2182
        %v2254 = vunpack.c.l.b16 %v2183
        %v2255 = vunpack.c.l.b16 %v2184
        %v2256 = vunpack.c.l.b16 %v2185
        %v2257 = vunpack.c.l.b16 %v2186
        %v2258 = vunpack.c.l.b16 %v2187
        %v2259 = vunpack.c.l.b16 %v2188
        %v2260 = vunpack.c.l.b16 %v2189
        %v2261 = vunpack.c.l.b16 %v2190
        %v2262 = vunpack.c.l.b16 %v2191
        %v2263 = vunpack.c.l.b16 %v2192
        %v2264 = vunpack.c.l.b16 %v2193
        %v2265 = vunpack.c.l.b16 %v2194
        %v2266 = vunpack.c.l.b16 %v2195
        %v2267 = vunpack.c.l.b16 %v2196
        %v2268 = vunpack.c.l.b16 %v2197
        %v2269 = vunpack.c.l.b16 %v2198
        %v2270 = vunpack.c.l.b16 %v2199
        %v2271 = vunpack.c.l.b16 %v2200
        %v2272 = vunpack.c.l.b16 %v2201
        %v2273 = vunpack.c.l.b16 %v2202
        %v2274 = vunpack.c.l.b16 %v2203
        %v2275 = vunpack.c.l.b16 %v2204
        %v2276 = vunpack.c.l.b16 %v2205
        %v2277 = vunpack.c.l.b16 %v2206
        %v2278 = vunpack.c.l.b16 %v2207
        %v2279 = vunpack.c.l.b16 %v2208
        %v2280 = vunpack.c.l.b16 %v2209
        %v2281 = vunpack.c.l.b16 %v2210
        %v2282 = vunpack.c.l.b16 %v2211
        %v2283 = vpack.c.b16 %v2252, %v2251
        %v2284 = vpack.c.b16 %v2254, %v2253
        %v2285 = vpack.c.b16 %v2256, %v2255
        %v2286 = vpack.c.b16 %v2258, %v2257
        %v2287 = vpack.c.b16 %v2260, %v2259
        %v2288 = vpack.c.b16 %v2262, %v2261
        %v2289 = vpack.c.b16 %v2264, %v2263
        %v2290 = vpack.c.b16 %v2266, %v2265
        %v2291 = vpack.c.b16 %v2268, %v2267
        %v2292 = vpack.c.b16 %v2270, %v2269
        %v2293 = vpack.c.b16 %v2272, %v2271
        %v2294 = vpack.c.b16 %v2274, %v2273
        %v2295 = vpack.c.b16 %v2276, %v2275
        %v2296 = vpack.c.b16 %v2278, %v2277
        %v2297 = vpack.c.b16 %v2280, %v2279
        %v2298 = vpack.c.b16 %v2282, %v2281
        %2315 = vmatprep.subr.bf16.mxu0 0
        %2316 = vmatpush1.bf16.msra.mxu0 %v2283
        %2317 = vmatprep.subr.bf16.mxu0 0
        %2318 = vmatpush1.bf16.msra.mxu0 %v2284
        %2319 = vmatprep.subr.bf16.mxu0 0
        %2320 = vmatpush1.bf16.msra.mxu0 %v2285
        %2321 = vmatprep.subr.bf16.mxu0 0
        %2322 = vmatpush1.bf16.msra.mxu0 %v2286
        %2323 = vmatprep.subr.bf16.mxu0 0
        %2324 = vmatpush1.bf16.msra.mxu0 %v2287
        %2325 = vmatprep.subr.bf16.mxu0 0
        %2326 = vmatpush1.bf16.msra.mxu0 %v2288
        %2327 = vmatprep.subr.bf16.mxu0 0
        %2328 = vmatpush1.bf16.msra.mxu0 %v2289
        %2329 = vmatprep.subr.bf16.mxu0 0
        %2330 = vmatpush1.bf16.msra.mxu0 %v2290
        %2331 = vmatprep.subr.bf16.mxu0 0
        %2332 = vmatpush1.bf16.msra.mxu0 %v2291
        %2333 = vmatprep.subr.bf16.mxu0 0
        %2334 = vmatpush1.bf16.msra.mxu0 %v2292
        %2335 = vmatprep.subr.bf16.mxu0 0
        %2336 = vmatpush1.bf16.msra.mxu0 %v2293
        %2337 = vmatprep.subr.bf16.mxu0 0
        %2338 = vmatpush1.bf16.msra.mxu0 %v2294
        %2339 = vmatprep.subr.bf16.mxu0 0
        %2340 = vmatpush1.bf16.msra.mxu0 %v2295
        %2341 = vmatprep.subr.bf16.mxu0 0
        %2342 = vmatpush1.bf16.msra.mxu0 %v2296
        %2343 = vmatprep.subr.bf16.mxu0 0
        %2344 = vmatpush1.bf16.msra.mxu0 %v2297
        %2345 = vmatprep.subr.bf16.mxu0 0
        %2346 = vmatpush1.bf16.msra.mxu0 %v2298
        %2347 = vmatprep.mubr.bf16.mxu0 %v2179
        %2348 = vmatmul.mubr.bf16.gmra.mrb[0].mxu0 %v2178
        %v2349 = vpop.f32.mrb[0].mxu0
        %v2350 = vadd.f32 %v2217, %v2349
        %v2351 = vpop.f32.mrb[0].mxu0
        %v2352 = vpop.f32.mrb[0].mxu0
        %v2353 = vpop.f32.mrb[0].mxu0
        %2354 = vdwg.mxu0
        %v2355 = vadd.f32 %v2025, %v2350
        %v2356 = vld [vmem:[%s878] sm:$0x1]
        %v2357 = vld [vmem:[%s881] sm:$0x1]
        %2358 = vadd.xlane.f32.xlu0 %v2355
        %v2359 = vpop.xlane.xlu0 %2358
        %v2360 = vmul.f32 %v2359, %v2000
        %v2361 = vmul.f32 %v2355, %v2355
        %2362 = vadd.xlane.f32.xlu0 %v2361
        %v2363 = vpop.xlane.xlu0 %2362
        %v2364 = vmul.f32 %v2363, %v2000
        %v2365 = vmul.f32 %v2360, %v2360
        %v2366 = vsub.f32 %v2364, %v2365
        %v2367 = vsub.f32 %v2355, %v2360
        %v2368 = vadd.f32 %v2366, 1e-05
        %v2369 = vrsqrt.pop %v2368
        %v2370 = vmul.f32 %v2367, %v2369
        %v2372 = vlaneseq
        %v2373 = vshrl.u32 %v2372, 7
        %v2374 = vsub.s32 0, %v2373
        %v2375 = vrot.slane %v2356, %v2374
        %v2377 = vmul.f32 %v2370, %v2375
        %v2379 = vlaneseq
        %v2380 = vshrl.u32 %v2379, 7
        %v2381 = vsub.s32 0, %v2380
        %v2382 = vrot.slane %v2357, %v2381
        %v2384 = vadd.f32 %v2377, %v2382
        %2385 = vst [vmem:[#allocation2] sm:$0xff] %v2384
        %p2386 = scmp.eq.s32.totalorder %s38, 2
        // Predicated region
        $region101: #{tpu_custom_call.1} parent=95 // pred_check
          %p2387 = pneg %p2386
        $region102: #{tpu_custom_call.1} parent=95 // pred_check_branch
          %2389 = sbr.rel (%p2387) target = $region104
        $region103: #{tpu_custom_call.1} parent=95 // pred_region
          %2390 = vst [vmem:[%s813] sm:$0xff] %v2384
        $region104: #{tpu_custom_call.1} parent=95 // pred_fallthru
          _
        %s2391 = sand.u32 %s537, 1
        %s2392 = scalar_lea.sflag [#allocation4], %s2391
        %s2393 = sand.u32 %s537, 1
        %s2394 = smul.addr %s2393, 8
        %s2395 = scalar_lea.vmem [#allocation3], %s2394
        // Predicated region
        $region105: #{tpu_custom_call.1} parent=95 // pred_check
          %p2396 = pneg %p547
        $region106: #{tpu_custom_call.1} parent=95 // pred_check_branch
          %2398 = sbr.rel (%p2396) target = $region108
        $region107: #{tpu_custom_call.1} parent=95 // pred_region
          %s2400 = ssub.s32 128, 128
          %2401 = vsyncadd %s2392, %s2400
          %s2402 = smul.addr %s37, 128
          %s2403 = scalar_lea.hbm %s19, %s2402
          %s2405 = sshll.u32 %s2395, 4
          %s2406 = int_to_ptr.vmem [resolvable:$true] %s2405
          %2408 = dma.vmem_to_hbm [thread:$0]  %s2406, 128, %s2403, %s2392
        $region108: #{tpu_custom_call.1} parent=95 // pred_fallthru
          _
      $region96: #{tpu_custom_call.1} parent=5 // pred_fallthru
        _
      %p2409 = scmp.le.s32.totalorder 2, %s28
      // Predicated region
      $region109: #{tpu_custom_call.1} parent=5 // pred_check
        %p2410 = pneg %p2409
      $region110: #{tpu_custom_call.1} parent=5 // pred_check_branch
        %2412 = sbr.rel (%p2410) target = $region112
      $region111: #{tpu_custom_call.1} parent=5 // pred_region
        %s2413 = ssub.s32 %s28, 2
        // Predicated region
        $region113: #{tpu_custom_call.1} parent=111 // pred_check
          %p2414 = pneg %p553
        $region114: #{tpu_custom_call.1} parent=111 // pred_check_branch
          %2416 = sbr.rel (%p2414) target = $region116
        $region115: #{tpu_custom_call.1} parent=111 // pred_region
          %s2417 = sand.u32 %s538, 1
          %s2418 = scalar_lea.sflag [#allocation4], %s2417
          %s2419 = sand.u32 %s538, 1
          %s2420 = smul.addr %s2419, 8
          %s2421 = scalar_lea.vmem [#allocation3], %s2420
          %2422 = dma.done %s2418, 128
        $region116: #{tpu_custom_call.1} parent=111 // pred_fallthru
          _
      $region112: #{tpu_custom_call.1} parent=5 // pred_fallthru
        _
    $region6: #{tpu_custom_call.1} parent=1 // loop_footer
      %s32 = sadd.s32 1, %s28
    $region7: #{tpu_custom_call.1} parent=1 // loop_footer_branch
      %27 = sbr.rel target = $region3
    $region8: #{tpu_custom_call.1} parent=1 // loop_exit
      _
    %2423 = vsyncpa [#allocation4], 1
    %s2424 = scalar_lea.sflag [#allocation4], 1
    %2425 = vsyncpa %s2424, 1

</llo_original>
